<compile_context>
chip_gen: v5e
topology: v5e:2x2
jax: 0.10.0
libtpu: 0.0.40
codegen_flags: <defaults>
</compile_context>

<pallas_src>
import math
from functools import partial

import jax
import jax.numpy as jnp
from jax import lax
from jax.experimental import pallas as pl
from jax.experimental.pallas import tpu as pltpu

# small, module-consistent hyper-parameters
EMBED_DIM = 32      # embed_dim
SELF_HEADS = 4      # self_heads
CROSS_HEADS = 4     # cross_heads
KDIM = 20           # kdim
VDIM = 20           # vdim
SEQ_LEN = 8         # query length (x)
KV_LEN = 6          # key/value length (x_k, x_v)
KV_PAD = 8          # kv tokens padded per batch (kept == SEQ_LEN)
BATCH = 2
LN_EPS = 1e-5
MASK_NEG = -1e9     # additive bias used for masked keys (stands in for -inf)

# ---- packed weight-slab row layout (all row offsets 8-aligned) --------------
_R_WQKV_S = 0                    # (32, 96) self-attn in_proj^T, cols [q|k|v]
_R_WCROSS = 32                   # (72, 96) cross-attn block-diag [Wq;Wk;Wv]^T
_R_WO3 = 104                     # (32, 96) cols [self_out^T | cross_out^T | fc1^T]
_R_W2 = 136                      # (32, 96) cols [fc2^T | - | -]
_R_VECS = 168                    # (8, 96)  packed bias / LayerNorm rows
_SLAB_ROWS = 176
_SLAB_COLS = 3 * EMBED_DIM       # 96


def _vmem():
    return pl.BlockSpec(memory_space=pltpu.MemorySpace.VMEM)


# ---------------------------------------------------------------------------
# Fused kernel: whole BimodalFusionLayer in one pallas_call (no grid)
# ---------------------------------------------------------------------------
def _fusion_kernel(x_ref, xkv_ref, mask_ref, w_ref, o_ref, *,
                   self_heads, cross_heads):
    f32 = jnp.float32
    NT, D = x_ref.shape            # (B*S, 32) batch-major query tokens
    KD, VD = KDIM, VDIM

    x0 = x_ref[...]                                    # (NT, D)
    xkv = xkv_ref[...]                                 # (NK, KD+VD) padded kv tokens
    mask_s = mask_ref[0]                               # (Hs*NT, Hs*NT)
    mask_c = mask_ref[1]                               # (Hc*NT, Hc*NK)

    # ---- static slices of the packed constant slab (single DMA) -------------
    wqkv_s = w_ref[_R_WQKV_S:_R_WQKV_S + D, :]                 # (32, 96)
    wcross = w_ref[_R_WCROSS:_R_WCROSS + D + KD + VD, :]       # (72, 96)
    wo3 = w_ref[_R_WO3:_R_WO3 + D, :]                          # (32, 96)
    wo_s, wo_c, w1 = wo3[:, 0:D], wo3[:, D:2 * D], wo3[:, 2 * D:3 * D]
    w2 = w_ref[_R_W2:_R_W2 + D, :][:, 0:D]
    vecs = w_ref[_R_VECS:_R_VECS + 8, :]                       # (8, 96)
    bqkv_s = vecs[0:1, :]
    bcross = vecs[1:2, :]
    bo_s, bo_c, b1 = vecs[2:3, 0:D], vecs[2:3, D:2 * D], vecs[2:3, 2 * D:3 * D]
    b2, g0, be0 = vecs[3:4, 0:D], vecs[3:4, D:2 * D], vecs[3:4, 2 * D:3 * D]
    g1, be1, g2 = vecs[4:5, 0:D], vecs[4:5, D:2 * D], vecs[4:5, 2 * D:3 * D]
    be2 = vecs[5:6, 0:D]

    def layer_norm(t, g, be):
        mu = jnp.mean(t, axis=-1, keepdims=True)
        c = t - mu
        var = jnp.mean(c * c, axis=-1, keepdims=True)
        return c * lax.rsqrt(var + LN_EPS) * g + be

    def split_heads(t, H, Dh):     # (n, H*Dh) -> (H*n, Dh), head-major rows
        return jnp.concatenate([t[:, h * Dh:(h + 1) * Dh] for h in range(H)], axis=0)

    def merge_heads(t, n_q, H):    # (H*n_q, Dh) -> (n_q, H*Dh)
        return jnp.concatenate([t[h * n_q:(h + 1) * n_q, :] for h in range(H)], axis=-1)

    def attention(q2, k2, v2, n_q, H, add_mask):
        # Flattened block-diagonal attention: heads folded into rows so scores
        # and context are ONE MXU dispatch each. `add_mask` carries both the
        # off-block-diagonal MASK_NEG and the key-padding bias.
        Dh = D // H
        qf = split_heads(q2, H, Dh)                    # (H*n_q, Dh)
        kf = split_heads(k2, H, Dh)                    # (H*n_k, Dh)
        vf = split_heads(v2, H, Dh)
        s = jnp.einsum("qd,kd->qk", qf, kf, preferred_element_type=f32)
        s = s * (1.0 / math.sqrt(Dh)) + add_mask
        s = s - jnp.max(s, axis=-1, keepdims=True)
        p = jnp.exp(s)
        p = p * pl.reciprocal(jnp.sum(p, axis=-1, keepdims=True), approx=False)
        ctx = jnp.dot(p, vf, preferred_element_type=f32)      # (H*n_q, Dh)
        return merge_heads(ctx, n_q, H)                       # (n_q, D)

    # ---- self attention + residual + LN0 (fused QKV projection) -------------
    qkv = jnp.dot(x0, wqkv_s, preferred_element_type=f32) + bqkv_s      # (NT, 3D)
    ctx_s = attention(qkv[:, 0:D], qkv[:, D:2 * D], qkv[:, 2 * D:3 * D],
                      NT, self_heads, mask_s)
    sa = jnp.dot(ctx_s, wo_s, preferred_element_type=f32) + bo_s
    x1 = layer_norm(x0 + sa, g0, be0)

    # ---- cross attention (single block-diag q/k/v matmul); residual = x0 ----
    cin = jnp.concatenate([x1, xkv], axis=-1)                           # (NT, D+KD+VD)
    qkv_c = jnp.dot(cin, wcross, preferred_element_type=f32) + bcross   # (NT, 3D)
    ctx_c = attention(qkv_c[:, 0:D], qkv_c[:, D:2 * D], qkv_c[:, 2 * D:3 * D],
                      NT, cross_heads, mask_c)
    ca = jnp.dot(ctx_c, wo_c, preferred_element_type=f32) + bo_c
    x2 = layer_norm(x0 + ca, g1, be1)

    # ---- position-wise FFN + residual + LN2 (dropouts are identity) ---------
    h = jnp.maximum(jnp.dot(x2, w1, preferred_element_type=f32) + b1, 0.0)
    h2 = jnp.dot(h, w2, preferred_element_type=f32) + b2
    o_ref[...] = layer_norm(x2 + h2, g2, be2).astype(o_ref.dtype)


# ---------------------------------------------------------------------------
# Wrapper: layout plumbing + mask precompute outside the kernel (jit/XLA side)
# ---------------------------------------------------------------------------
def _flat_head_mask(key_ignore, heads, batch, q_len, k_len):
    """(heads*batch*q_len, heads*batch*k_len) additive mask: 0 on the per-(head,
    batch) diagonal blocks with valid keys, MASK_NEG everywhere else."""
    r = jnp.arange(heads * batch * q_len)
    c = jnp.arange(heads * batch * k_len)
    r_h, r_b = r // (batch * q_len), (r // q_len) % batch
    c_h, c_b, c_s = c // (batch * k_len), (c // k_len) % batch, c % k_len
    same = (r_h[:, None] == c_h[None, :]) & (r_b[:, None] == c_b[None, :])
    ok = same & jnp.logical_not(key_ignore)[c_b, c_s][None, :]
    return jnp.where(ok, 0.0, MASK_NEG).astype(jnp.float32)


def _forward_impl(x, x_k, x_v, key_padding_mask, attn_mask, slab):
    S, B, D = x.shape
    Sk = x_k.shape[0]
    Skp = KV_PAD
    assert Skp == S and SELF_HEADS == CROSS_HEADS, \
        "mask stacking assumes padded kv length == query length, equal head counts"

    # lane-dense kernel I/O: batch-major token slabs built in the wrapper (free)
    x2d = x.transpose(1, 0, 2).reshape(B * S, D)
    xk = jnp.pad(x_k.transpose(1, 0, 2), ((0, 0), (0, Skp - Sk), (0, 0)))
    xv = jnp.pad(x_v.transpose(1, 0, 2), ((0, 0), (0, Skp - Sk), (0, 0)))
    xkv = jnp.concatenate([xk.reshape(B * Skp, -1), xv.reshape(B * Skp, -1)], axis=-1)

    # additive masks for the flattened-head attention, precomputed outside kernel
    self_km = attn_mask.astype(bool)                          # (B, S)  True = ignore
    pad_cols = jnp.ones((B, Skp - Sk), dtype=bool)
    cross_km = jnp.concatenate([key_padding_mask.astype(bool), pad_cols], axis=1)
    masks = jnp.stack([_flat_head_mask(self_km, SELF_HEADS, B, S, S),
                       _flat_head_mask(cross_km, CROSS_HEADS, B, S, Skp)], axis=0)

    out2d = pl.pallas_call(
        partial(_fusion_kernel, self_heads=SELF_HEADS, cross_heads=CROSS_HEADS),
        out_shape=jax.ShapeDtypeStruct((B * S, D), jnp.float32),
        in_specs=[_vmem()] * 4,
        out_specs=_vmem(),
    )(x2d, xkv, masks, slab)
    return out2d.reshape(B, S, D).transpose(1, 0, 2)          # back to (S, B, D)


bimodal_fusion_forward = jax.jit(_forward_impl)


# ---------------------------------------------------------------------------
# Parameters (PyTorch layout) and one-time packed-slab conversion (hoisted)
# ---------------------------------------------------------------------------
def init_params(key):
    D, Kd, Vd = EMBED_DIM, KDIM, VDIM
    ks = jax.random.split(key, 20)
    w = lambda k, shape, s=0.1: (s * jax.random.normal(k, shape)).astype(jnp.float32)
    return {
        "self_in_proj_w": w(ks[0], (3 * D, D)),   # nn.MultiheadAttention in_proj
        "self_in_proj_b": w(ks[1], (3 * D,)),
        "self_out_w": w(ks[2], (D, D)),
        "self_out_b": w(ks[3], (D,)),
        "cross_q_w": w(ks[4], (D, D)),            # q/k/v proj (kdim,vdim != embed_dim)
        "cross_k_w": w(ks[5], (D, Kd)),
        "cross_v_w": w(ks[6], (D, Vd)),
        "cross_in_proj_b": w(ks[7], (3 * D,)),
        "cross_out_w": w(ks[8], (D, D)),
        "cross_out_b": w(ks[9], (D,)),
        "fc1_w": w(ks[10], (D, D)), "fc1_b": w(ks[11], (D,)),
        "fc2_w": w(ks[12], (D, D)), "fc2_b": w(ks[13], (D,)),
        "ln0_g": 1.0 + w(ks[14], (D,)), "ln0_b": w(ks[15], (D,)),
        "ln1_g": 1.0 + w(ks[16], (D,)), "ln1_b": w(ks[17], (D,)),
        "ln2_g": 1.0 + w(ks[18], (D,)), "ln2_b": w(ks[19], (D,)),
    }


def to_kernel_layout(p):
    """Pack ALL weights/biases/LN params into one lane-dense f32 slab (176, 96).
    Built ONCE at init; the kernel slices it statically. Single input DMA."""
    D, Kd, Vd = EMBED_DIM, KDIM, VDIM
    slab = jnp.zeros((_SLAB_ROWS, _SLAB_COLS), jnp.float32)
    slab = slab.at[_R_WQKV_S:_R_WQKV_S + D, :].set(p["self_in_proj_w"].T)
    # cross-attn block-diagonal [Wq^T; Wk^T; Wv^T] -> one (72, 96) matmul operand
    slab = slab.at[_R_WCROSS:_R_WCROSS + D, 0:D].set(p["cross_q_w"].T)
    slab = slab.at[_R_WCROSS + D:_R_WCROSS + D + Kd, D:2 * D].set(p["cross_k_w"].T)
    slab = slab.at[_R_WCROSS + D + Kd:_R_WCROSS + D + Kd + Vd, 2 * D:3 * D].set(p["cross_v_w"].T)
    slab = slab.at[_R_WO3:_R_WO3 + D, 0:D].set(p["self_out_w"].T)
    slab = slab.at[_R_WO3:_R_WO3 + D, D:2 * D].set(p["cross_out_w"].T)
    slab = slab.at[_R_WO3:_R_WO3 + D, 2 * D:3 * D].set(p["fc1_w"].T)
    slab = slab.at[_R_W2:_R_W2 + D, 0:D].set(p["fc2_w"].T)
    v = _R_VECS
    slab = slab.at[v + 0, :].set(p["self_in_proj_b"])
    slab = slab.at[v + 1, :].set(p["cross_in_proj_b"])
    slab = slab.at[v + 2, 0:D].set(p["self_out_b"])
    slab = slab.at[v + 2, D:2 * D].set(p["cross_out_b"])
    slab = slab.at[v + 2, 2 * D:3 * D].set(p["fc1_b"])
    slab = slab.at[v + 3, 0:D].set(p["fc2_b"])
    slab = slab.at[v + 3, D:2 * D].set(p["ln0_g"])
    slab = slab.at[v + 3, 2 * D:3 * D].set(p["ln0_b"])
    slab = slab.at[v + 4, 0:D].set(p["ln1_g"])
    slab = slab.at[v + 4, D:2 * D].set(p["ln1_b"])
    slab = slab.at[v + 4, 2 * D:3 * D].set(p["ln2_g"])
    slab = slab.at[v + 5, 0:D].set(p["ln2_b"])
    return slab


# ---------------------------------------------------------------------------
# Pure-JAX reference (mirrors the PyTorch module math)
# ---------------------------------------------------------------------------
def _layernorm_ref(x, g, b):
    mu = jnp.mean(x, axis=-1, keepdims=True)
    var = jnp.mean((x - mu) ** 2, axis=-1, keepdims=True)
    return (x - mu) / jnp.sqrt(var + LN_EPS) * g + b


def _mha_ref(q_in, k_in, v_in, wq, bq, wk, bk, wv, bv, wo, bo, nheads, key_mask):
    hp = jax.lax.Precision.HIGHEST
    S, B, D = q_in.shape
    Sk = k_in.shape[0]
    Dh = D // nheads
    q = jnp.einsum("sbe,de->sbd", q_in, wq, precision=hp) + bq
    k = jnp.einsum("sbe,de->sbd", k_in, wk, precision=hp) + bk
    v = jnp.einsum("sbe,de->sbd", v_in, wv, precision=hp) + bv
    q = q.reshape(S, B, nheads, Dh)
    k = k.reshape(Sk, B, nheads, Dh)
    v = v.reshape(Sk, B, nheads, Dh)
    s = jnp.einsum("qbhd,kbhd->bhqk", q, k, precision=hp) / math.sqrt(Dh)
    s = s + jnp.where(key_mask, MASK_NEG, 0.0)[:, None, None, :]
    a = jax.nn.softmax(s, axis=-1)
    ctx = jnp.einsum("bhqk,kbhd->qbhd", a, v, precision=hp).reshape(S, B, D)
    return jnp.einsum("sbe,de->sbd", ctx, wo, precision=hp) + bo


def reference_forward(x, x_k, x_v, key_padding_mask, attn_mask, p):
    hp = jax.lax.Precision.HIGHEST
    D = EMBED_DIM
    wq_s, wk_s, wv_s = (p["self_in_proj_w"][:D], p["self_in_proj_w"][D:2 * D],
                        p["self_in_proj_w"][2 * D:])
    bq_s, bk_s, bv_s = (p["self_in_proj_b"][:D], p["self_in_proj_b"][D:2 * D],
                        p["self_in_proj_b"][2 * D:])
    residual = x
    sa = _mha_ref(x, x, x, wq_s, bq_s, wk_s, bk_s, wv_s, bv_s,
                  p["self_out_w"], p["self_out_b"], SELF_HEADS, attn_mask)
    x1 = _layernorm_ref(residual + sa, p["ln0_g"], p["ln0_b"])

    bq_c, bk_c, bv_c = (p["cross_in_proj_b"][:D], p["cross_in_proj_b"][D:2 * D],
                        p["cross_in_proj_b"][2 * D:])
    ca = _mha_ref(x1, x_k, x_v, p["cross_q_w"], bq_c, p["cross_k_w"], bk_c,
                  p["cross_v_w"], bv_c, p["cross_out_w"], p["cross_out_b"],
                  CROSS_HEADS, key_padding_mask)
    x2 = _layernorm_ref(residual + ca, p["ln1_g"], p["ln1_b"])   # residual = original x

    h = jax.nn.relu(jnp.einsum("sbe,de->sbd", x2, p["fc1_w"], precision=hp) + p["fc1_b"])
    h2 = jnp.einsum("sbe,de->sbd", h, p["fc2_w"], precision=hp) + p["fc2_b"]
    return _layernorm_ref(x2 + h2, p["ln2_g"], p["ln2_b"])


if __name__ == "__main__":
    key = jax.random.PRNGKey(0)
    kx, kk, kv, kp = jax.random.split(key, 4)

    x = jax.random.normal(kx, (SEQ_LEN, BATCH, EMBED_DIM), jnp.float32)
    x_k = jax.random.normal(kk, (KV_LEN, BATCH, KDIM), jnp.float32)
    x_v = jax.random.normal(kv, (KV_LEN, BATCH, VDIM), jnp.float32)

    # PyTorch key_padding_mask convention: (batch, src_len), True = padded key.
    key_padding_mask = jnp.zeros((BATCH, KV_LEN), jnp.bool_).at[1, KV_LEN - 1].set(True)
    attn_mask = jnp.zeros((BATCH, SEQ_LEN), jnp.bool_).at[0, SEQ_LEN - 1].set(True)

    torch_params = init_params(kp)
    slab = to_kernel_layout(torch_params)   # hoisted: built once, not per-forward

    out = bimodal_fusion_forward(x, x_k, x_v, key_padding_mask, attn_mask, slab)
    out = jax.block_until_ready(out)

    ref = reference_forward(x, x_k, x_v, key_padding_mask, attn_mask, torch_params)
    assert out.shape == (SEQ_LEN, BATCH, EMBED_DIM) and out.dtype == jnp.float32
    max_err = float(jnp.max(jnp.abs(out - ref)))
    assert jnp.allclose(out, ref, atol=2e-4, rtol=2e-4), f"max_err={max_err}"

    print("KERNEL_OK")
</pallas_src>

<mosaic_0001>
module attributes {stable_mosaic.version = 11 : i64} {
  func.func @_fusion_kernel(%arg0: memref<16x32xf32, #tpu.memory_space<vmem>>, %arg1: memref<16x40xf32, #tpu.memory_space<vmem>>, %arg2: memref<2x64x64xf32, #tpu.memory_space<vmem>>, %arg3: memref<176x96xf32, #tpu.memory_space<vmem>>, %arg4: memref<16x32xf32, #tpu.memory_space<vmem>>) attributes {dimension_semantics = [], scalar_prefetch = 0 : i64, scratch_operands = 0 : i64, tpu.core_type = #tpu.core_type<tc>} {
    %c0 = arith.constant 0 : index
    %c0_0 = arith.constant 0 : index
    %0 = vector.load %arg0[%c0, %c0_0] : memref<16x32xf32, #tpu.memory_space<vmem>>, vector<16x32xf32>
    %c0_1 = arith.constant 0 : index
    %c0_2 = arith.constant 0 : index
    %1 = vector.load %arg1[%c0_1, %c0_2] : memref<16x40xf32, #tpu.memory_space<vmem>>, vector<16x40xf32>
    %c0_3 = arith.constant 0 : index
    %c0_4 = arith.constant 0 : index
    %c0_5 = arith.constant 0 : index
    %2 = vector.load %arg2[%c0_3, %c0_4, %c0_5] : memref<2x64x64xf32, #tpu.memory_space<vmem>>, vector<1x64x64xf32>
    %3 = vector.shape_cast %2 : vector<1x64x64xf32> to vector<64x64xf32>
    %c1 = arith.constant 1 : index
    %c0_6 = arith.constant 0 : index
    %c0_7 = arith.constant 0 : index
    %4 = vector.load %arg2[%c1, %c0_6, %c0_7] : memref<2x64x64xf32, #tpu.memory_space<vmem>>, vector<1x64x64xf32>
    %5 = vector.shape_cast %4 : vector<1x64x64xf32> to vector<64x64xf32>
    %c0_8 = arith.constant 0 : index
    %c0_9 = arith.constant 0 : index
    %6 = vector.load %arg3[%c0_8, %c0_9] : memref<176x96xf32, #tpu.memory_space<vmem>>, vector<32x96xf32>
    %c32 = arith.constant 32 : index
    %c0_10 = arith.constant 0 : index
    %7 = vector.load %arg3[%c32, %c0_10] : memref<176x96xf32, #tpu.memory_space<vmem>>, vector<72x96xf32>
    %c104 = arith.constant 104 : index
    %c0_11 = arith.constant 0 : index
    %8 = vector.load %arg3[%c104, %c0_11] : memref<176x96xf32, #tpu.memory_space<vmem>>, vector<32x96xf32>
    %9 = vector.extract_strided_slice %8 {offsets = [0, 0], sizes = [32, 32], strides = [1, 1]} : vector<32x96xf32> to vector<32x32xf32>
    %10 = vector.extract_strided_slice %8 {offsets = [0, 32], sizes = [32, 32], strides = [1, 1]} : vector<32x96xf32> to vector<32x32xf32>
    %11 = vector.extract_strided_slice %8 {offsets = [0, 64], sizes = [32, 32], strides = [1, 1]} : vector<32x96xf32> to vector<32x32xf32>
    %c136 = arith.constant 136 : index
    %c0_12 = arith.constant 0 : index
    %12 = vector.load %arg3[%c136, %c0_12] : memref<176x96xf32, #tpu.memory_space<vmem>>, vector<32x96xf32>
    %13 = vector.extract_strided_slice %12 {offsets = [0, 0], sizes = [32, 32], strides = [1, 1]} : vector<32x96xf32> to vector<32x32xf32>
    %c168 = arith.constant 168 : index
    %c0_13 = arith.constant 0 : index
    %14 = vector.load %arg3[%c168, %c0_13] : memref<176x96xf32, #tpu.memory_space<vmem>>, vector<8x96xf32>
    %15 = vector.extract_strided_slice %14 {offsets = [0, 0], sizes = [1, 96], strides = [1, 1]} : vector<8x96xf32> to vector<1x96xf32>
    %16 = vector.extract_strided_slice %14 {offsets = [1, 0], sizes = [1, 96], strides = [1, 1]} : vector<8x96xf32> to vector<1x96xf32>
    %17 = vector.extract_strided_slice %14 {offsets = [2, 0], sizes = [1, 32], strides = [1, 1]} : vector<8x96xf32> to vector<1x32xf32>
    %18 = vector.extract_strided_slice %14 {offsets = [2, 32], sizes = [1, 32], strides = [1, 1]} : vector<8x96xf32> to vector<1x32xf32>
    %19 = vector.extract_strided_slice %14 {offsets = [2, 64], sizes = [1, 32], strides = [1, 1]} : vector<8x96xf32> to vector<1x32xf32>
    %20 = vector.extract_strided_slice %14 {offsets = [3, 0], sizes = [1, 32], strides = [1, 1]} : vector<8x96xf32> to vector<1x32xf32>
    %21 = vector.extract_strided_slice %14 {offsets = [3, 32], sizes = [1, 32], strides = [1, 1]} : vector<8x96xf32> to vector<1x32xf32>
    %22 = vector.extract_strided_slice %14 {offsets = [3, 64], sizes = [1, 32], strides = [1, 1]} : vector<8x96xf32> to vector<1x32xf32>
    %23 = vector.extract_strided_slice %14 {offsets = [4, 0], sizes = [1, 32], strides = [1, 1]} : vector<8x96xf32> to vector<1x32xf32>
    %24 = vector.extract_strided_slice %14 {offsets = [4, 32], sizes = [1, 32], strides = [1, 1]} : vector<8x96xf32> to vector<1x32xf32>
    %25 = vector.extract_strided_slice %14 {offsets = [4, 64], sizes = [1, 32], strides = [1, 1]} : vector<8x96xf32> to vector<1x32xf32>
    %26 = vector.extract_strided_slice %14 {offsets = [5, 0], sizes = [1, 32], strides = [1, 1]} : vector<8x96xf32> to vector<1x32xf32>
    %cst = arith.constant dense<0.000000e+00> : vector<16x96xf32>
    %27 = tpu.matmul %0, %6, %cst {dimension_numbers = #tpu.dot_dimension_numbers<[1], [0], [0], [1], [0, 0, 1, 1], [], []>} : vector<16x32xf32>, vector<32x96xf32>, vector<16x96xf32> -> vector<16x96xf32>
    %28 = vector.broadcast %15 : vector<1x96xf32> to vector<16x96xf32>
    %29 = arith.addf %27, %28 : vector<16x96xf32>
    %30 = vector.extract_strided_slice %29 {offsets = [0, 0], sizes = [16, 32], strides = [1, 1]} : vector<16x96xf32> to vector<16x32xf32>
    %31 = vector.extract_strided_slice %29 {offsets = [0, 32], sizes = [16, 32], strides = [1, 1]} : vector<16x96xf32> to vector<16x32xf32>
    %32 = vector.extract_strided_slice %29 {offsets = [0, 64], sizes = [16, 32], strides = [1, 1]} : vector<16x96xf32> to vector<16x32xf32>
    %33 = vector.extract_strided_slice %30 {offsets = [0, 0], sizes = [16, 8], strides = [1, 1]} : vector<16x32xf32> to vector<16x8xf32>
    %34 = vector.extract_strided_slice %30 {offsets = [0, 8], sizes = [16, 8], strides = [1, 1]} : vector<16x32xf32> to vector<16x8xf32>
    %35 = vector.extract_strided_slice %30 {offsets = [0, 16], sizes = [16, 8], strides = [1, 1]} : vector<16x32xf32> to vector<16x8xf32>
    %36 = vector.extract_strided_slice %30 {offsets = [0, 24], sizes = [16, 8], strides = [1, 1]} : vector<16x32xf32> to vector<16x8xf32>
    %37 = tpu.concatenate %33, %34, %35, %36 in 0 : vector<16x8xf32>, vector<16x8xf32>, vector<16x8xf32>, vector<16x8xf32> -> vector<64x8xf32>
    %38 = vector.extract_strided_slice %31 {offsets = [0, 0], sizes = [16, 8], strides = [1, 1]} : vector<16x32xf32> to vector<16x8xf32>
    %39 = vector.extract_strided_slice %31 {offsets = [0, 8], sizes = [16, 8], strides = [1, 1]} : vector<16x32xf32> to vector<16x8xf32>
    %40 = vector.extract_strided_slice %31 {offsets = [0, 16], sizes = [16, 8], strides = [1, 1]} : vector<16x32xf32> to vector<16x8xf32>
    %41 = vector.extract_strided_slice %31 {offsets = [0, 24], sizes = [16, 8], strides = [1, 1]} : vector<16x32xf32> to vector<16x8xf32>
    %42 = tpu.concatenate %38, %39, %40, %41 in 0 : vector<16x8xf32>, vector<16x8xf32>, vector<16x8xf32>, vector<16x8xf32> -> vector<64x8xf32>
    %43 = vector.extract_strided_slice %32 {offsets = [0, 0], sizes = [16, 8], strides = [1, 1]} : vector<16x32xf32> to vector<16x8xf32>
    %44 = vector.extract_strided_slice %32 {offsets = [0, 8], sizes = [16, 8], strides = [1, 1]} : vector<16x32xf32> to vector<16x8xf32>
    %45 = vector.extract_strided_slice %32 {offsets = [0, 16], sizes = [16, 8], strides = [1, 1]} : vector<16x32xf32> to vector<16x8xf32>
    %46 = vector.extract_strided_slice %32 {offsets = [0, 24], sizes = [16, 8], strides = [1, 1]} : vector<16x32xf32> to vector<16x8xf32>
    %47 = tpu.concatenate %43, %44, %45, %46 in 0 : vector<16x8xf32>, vector<16x8xf32>, vector<16x8xf32>, vector<16x8xf32> -> vector<64x8xf32>
    "tpu.trace_start"() <{level = 10 : i32, message = "qd,kd->qk"}> : () -> ()
    %cst_14 = arith.constant dense<0.000000e+00> : vector<64x64xf32>
    %48 = tpu.matmul %37, %42, %cst_14 {dimension_numbers = #tpu.dot_dimension_numbers<[1], [1], [0], [0], [0, 0, 1, 0], [], []>} : vector<64x8xf32>, vector<64x8xf32>, vector<64x64xf32> -> vector<64x64xf32>
    "tpu.trace_stop"() : () -> ()
    %cst_15 = arith.constant 0.353553385 : f32
    %49 = vector.broadcast %cst_15 : f32 to vector<64x64xf32>
    %50 = arith.mulf %48, %49 : vector<64x64xf32>
    %51 = arith.addf %50, %3 : vector<64x64xf32>
    %cst_16 = arith.constant dense<0xFF800000> : vector<64xf32>
    %52 = vector.multi_reduction <maximumf>, %51, %cst_16 [1] : vector<64x64xf32> to vector<64xf32>
    %53 = vector.shape_cast %52 : vector<64xf32> to vector<64x1xf32>
    %54 = vector.broadcast %53 : vector<64x1xf32> to vector<64x64xf32>
    %55 = arith.subf %51, %54 : vector<64x64xf32>
    %56 = math.exp %55 : vector<64x64xf32>
    %cst_17 = arith.constant dense<0.000000e+00> : vector<64xf32>
    %57 = vector.multi_reduction <add>, %56, %cst_17 [1] : vector<64x64xf32> to vector<64xf32>
    %58 = vector.shape_cast %57 : vector<64xf32> to vector<64x1xf32>
    %59 = tpu.reciprocal %58 : vector<64x1xf32> -> vector<64x1xf32>
    %60 = vector.broadcast %59 : vector<64x1xf32> to vector<64x64xf32>
    %61 = arith.mulf %56, %60 : vector<64x64xf32>
    %cst_18 = arith.constant dense<0.000000e+00> : vector<64x8xf32>
    %62 = tpu.matmul %61, %47, %cst_18 {dimension_numbers = #tpu.dot_dimension_numbers<[1], [0], [0], [1], [0, 0, 1, 1], [], []>} : vector<64x64xf32>, vector<64x8xf32>, vector<64x8xf32> -> vector<64x8xf32>
    %63 = vector.extract_strided_slice %62 {offsets = [0, 0], sizes = [16, 8], strides = [1, 1]} : vector<64x8xf32> to vector<16x8xf32>
    %64 = vector.extract_strided_slice %62 {offsets = [16, 0], sizes = [16, 8], strides = [1, 1]} : vector<64x8xf32> to vector<16x8xf32>
    %65 = vector.extract_strided_slice %62 {offsets = [32, 0], sizes = [16, 8], strides = [1, 1]} : vector<64x8xf32> to vector<16x8xf32>
    %66 = vector.extract_strided_slice %62 {offsets = [48, 0], sizes = [16, 8], strides = [1, 1]} : vector<64x8xf32> to vector<16x8xf32>
    %67 = tpu.concatenate %63, %64, %65, %66 in 1 : vector<16x8xf32>, vector<16x8xf32>, vector<16x8xf32>, vector<16x8xf32> -> vector<16x32xf32>
    %cst_19 = arith.constant dense<0.000000e+00> : vector<16x32xf32>
    %68 = tpu.matmul %67, %9, %cst_19 {dimension_numbers = #tpu.dot_dimension_numbers<[1], [0], [0], [1], [0, 0, 1, 1], [], []>} : vector<16x32xf32>, vector<32x32xf32>, vector<16x32xf32> -> vector<16x32xf32>
    %69 = vector.broadcast %17 : vector<1x32xf32> to vector<16x32xf32>
    %70 = arith.addf %68, %69 : vector<16x32xf32>
    %71 = arith.addf %0, %70 : vector<16x32xf32>
    %cst_20 = arith.constant dense<0.000000e+00> : vector<16xf32>
    %72 = vector.multi_reduction <add>, %71, %cst_20 [1] : vector<16x32xf32> to vector<16xf32>
    %73 = vector.shape_cast %72 : vector<16xf32> to vector<16x1xf32>
    %cst_21 = arith.constant 3.200000e+01 : f32
    %74 = vector.broadcast %cst_21 : f32 to vector<16x1xf32>
    %75 = arith.divf %73, %74 : vector<16x1xf32>
    %76 = vector.broadcast %75 : vector<16x1xf32> to vector<16x32xf32>
    %77 = arith.subf %71, %76 : vector<16x32xf32>
    %78 = arith.mulf %77, %77 : vector<16x32xf32>
    %cst_22 = arith.constant dense<0.000000e+00> : vector<16xf32>
    %79 = vector.multi_reduction <add>, %78, %cst_22 [1] : vector<16x32xf32> to vector<16xf32>
    %80 = vector.shape_cast %79 : vector<16xf32> to vector<16x1xf32>
    %cst_23 = arith.constant 3.200000e+01 : f32
    %81 = vector.broadcast %cst_23 : f32 to vector<16x1xf32>
    %82 = arith.divf %80, %81 : vector<16x1xf32>
    %cst_24 = arith.constant 9.99999974E-6 : f32
    %83 = vector.broadcast %cst_24 : f32 to vector<16x1xf32>
    %84 = arith.addf %82, %83 : vector<16x1xf32>
    %85 = math.rsqrt %84 : vector<16x1xf32>
    %86 = vector.broadcast %85 : vector<16x1xf32> to vector<16x32xf32>
    %87 = arith.mulf %77, %86 : vector<16x32xf32>
    %88 = vector.broadcast %21 : vector<1x32xf32> to vector<16x32xf32>
    %89 = arith.mulf %87, %88 : vector<16x32xf32>
    %90 = vector.broadcast %22 : vector<1x32xf32> to vector<16x32xf32>
    %91 = arith.addf %89, %90 : vector<16x32xf32>
    %92 = tpu.concatenate %91, %1 in 1 : vector<16x32xf32>, vector<16x40xf32> -> vector<16x72xf32>
    %cst_25 = arith.constant dense<0.000000e+00> : vector<16x96xf32>
    %93 = tpu.matmul %92, %7, %cst_25 {dimension_numbers = #tpu.dot_dimension_numbers<[1], [0], [0], [1], [0, 0, 1, 1], [], []>} : vector<16x72xf32>, vector<72x96xf32>, vector<16x96xf32> -> vector<16x96xf32>
    %94 = vector.broadcast %16 : vector<1x96xf32> to vector<16x96xf32>
    %95 = arith.addf %93, %94 : vector<16x96xf32>
    %96 = vector.extract_strided_slice %95 {offsets = [0, 0], sizes = [16, 32], strides = [1, 1]} : vector<16x96xf32> to vector<16x32xf32>
    %97 = vector.extract_strided_slice %95 {offsets = [0, 32], sizes = [16, 32], strides = [1, 1]} : vector<16x96xf32> to vector<16x32xf32>
    %98 = vector.extract_strided_slice %95 {offsets = [0, 64], sizes = [16, 32], strides = [1, 1]} : vector<16x96xf32> to vector<16x32xf32>
    %99 = vector.extract_strided_slice %96 {offsets = [0, 0], sizes = [16, 8], strides = [1, 1]} : vector<16x32xf32> to vector<16x8xf32>
    %100 = vector.extract_strided_slice %96 {offsets = [0, 8], sizes = [16, 8], strides = [1, 1]} : vector<16x32xf32> to vector<16x8xf32>
    %101 = vector.extract_strided_slice %96 {offsets = [0, 16], sizes = [16, 8], strides = [1, 1]} : vector<16x32xf32> to vector<16x8xf32>
    %102 = vector.extract_strided_slice %96 {offsets = [0, 24], sizes = [16, 8], strides = [1, 1]} : vector<16x32xf32> to vector<16x8xf32>
    %103 = tpu.concatenate %99, %100, %101, %102 in 0 : vector<16x8xf32>, vector<16x8xf32>, vector<16x8xf32>, vector<16x8xf32> -> vector<64x8xf32>
    %104 = vector.extract_strided_slice %97 {offsets = [0, 0], sizes = [16, 8], strides = [1, 1]} : vector<16x32xf32> to vector<16x8xf32>
    %105 = vector.extract_strided_slice %97 {offsets = [0, 8], sizes = [16, 8], strides = [1, 1]} : vector<16x32xf32> to vector<16x8xf32>
    %106 = vector.extract_strided_slice %97 {offsets = [0, 16], sizes = [16, 8], strides = [1, 1]} : vector<16x32xf32> to vector<16x8xf32>
    %107 = vector.extract_strided_slice %97 {offsets = [0, 24], sizes = [16, 8], strides = [1, 1]} : vector<16x32xf32> to vector<16x8xf32>
    %108 = tpu.concatenate %104, %105, %106, %107 in 0 : vector<16x8xf32>, vector<16x8xf32>, vector<16x8xf32>, vector<16x8xf32> -> vector<64x8xf32>
    %109 = vector.extract_strided_slice %98 {offsets = [0, 0], sizes = [16, 8], strides = [1, 1]} : vector<16x32xf32> to vector<16x8xf32>
    %110 = vector.extract_strided_slice %98 {offsets = [0, 8], sizes = [16, 8], strides = [1, 1]} : vector<16x32xf32> to vector<16x8xf32>
    %111 = vector.extract_strided_slice %98 {offsets = [0, 16], sizes = [16, 8], strides = [1, 1]} : vector<16x32xf32> to vector<16x8xf32>
    %112 = vector.extract_strided_slice %98 {offsets = [0, 24], sizes = [16, 8], strides = [1, 1]} : vector<16x32xf32> to vector<16x8xf32>
    %113 = tpu.concatenate %109, %110, %111, %112 in 0 : vector<16x8xf32>, vector<16x8xf32>, vector<16x8xf32>, vector<16x8xf32> -> vector<64x8xf32>
    "tpu.trace_start"() <{level = 10 : i32, message = "qd,kd->qk"}> : () -> ()
    %cst_26 = arith.constant dense<0.000000e+00> : vector<64x64xf32>
    %114 = tpu.matmul %103, %108, %cst_26 {dimension_numbers = #tpu.dot_dimension_numbers<[1], [1], [0], [0], [0, 0, 1, 0], [], []>} : vector<64x8xf32>, vector<64x8xf32>, vector<64x64xf32> -> vector<64x64xf32>
    "tpu.trace_stop"() : () -> ()
    %cst_27 = arith.constant 0.353553385 : f32
    %115 = vector.broadcast %cst_27 : f32 to vector<64x64xf32>
    %116 = arith.mulf %114, %115 : vector<64x64xf32>
    %117 = arith.addf %116, %5 : vector<64x64xf32>
    %cst_28 = arith.constant dense<0xFF800000> : vector<64xf32>
    %118 = vector.multi_reduction <maximumf>, %117, %cst_28 [1] : vector<64x64xf32> to vector<64xf32>
    %119 = vector.shape_cast %118 : vector<64xf32> to vector<64x1xf32>
    %120 = vector.broadcast %119 : vector<64x1xf32> to vector<64x64xf32>
    %121 = arith.subf %117, %120 : vector<64x64xf32>
    %122 = math.exp %121 : vector<64x64xf32>
    %cst_29 = arith.constant dense<0.000000e+00> : vector<64xf32>
    %123 = vector.multi_reduction <add>, %122, %cst_29 [1] : vector<64x64xf32> to vector<64xf32>
    %124 = vector.shape_cast %123 : vector<64xf32> to vector<64x1xf32>
    %125 = tpu.reciprocal %124 : vector<64x1xf32> -> vector<64x1xf32>
    %126 = vector.broadcast %125 : vector<64x1xf32> to vector<64x64xf32>
    %127 = arith.mulf %122, %126 : vector<64x64xf32>
    %cst_30 = arith.constant dense<0.000000e+00> : vector<64x8xf32>
    %128 = tpu.matmul %127, %113, %cst_30 {dimension_numbers = #tpu.dot_dimension_numbers<[1], [0], [0], [1], [0, 0, 1, 1], [], []>} : vector<64x64xf32>, vector<64x8xf32>, vector<64x8xf32> -> vector<64x8xf32>
    %129 = vector.extract_strided_slice %128 {offsets = [0, 0], sizes = [16, 8], strides = [1, 1]} : vector<64x8xf32> to vector<16x8xf32>
    %130 = vector.extract_strided_slice %128 {offsets = [16, 0], sizes = [16, 8], strides = [1, 1]} : vector<64x8xf32> to vector<16x8xf32>
    %131 = vector.extract_strided_slice %128 {offsets = [32, 0], sizes = [16, 8], strides = [1, 1]} : vector<64x8xf32> to vector<16x8xf32>
    %132 = vector.extract_strided_slice %128 {offsets = [48, 0], sizes = [16, 8], strides = [1, 1]} : vector<64x8xf32> to vector<16x8xf32>
    %133 = tpu.concatenate %129, %130, %131, %132 in 1 : vector<16x8xf32>, vector<16x8xf32>, vector<16x8xf32>, vector<16x8xf32> -> vector<16x32xf32>
    %cst_31 = arith.constant dense<0.000000e+00> : vector<16x32xf32>
    %134 = tpu.matmul %133, %10, %cst_31 {dimension_numbers = #tpu.dot_dimension_numbers<[1], [0], [0], [1], [0, 0, 1, 1], [], []>} : vector<16x32xf32>, vector<32x32xf32>, vector<16x32xf32> -> vector<16x32xf32>
    %135 = vector.broadcast %18 : vector<1x32xf32> to vector<16x32xf32>
    %136 = arith.addf %134, %135 : vector<16x32xf32>
    %137 = arith.addf %0, %136 : vector<16x32xf32>
    %cst_32 = arith.constant dense<0.000000e+00> : vector<16xf32>
    %138 = vector.multi_reduction <add>, %137, %cst_32 [1] : vector<16x32xf32> to vector<16xf32>
    %139 = vector.shape_cast %138 : vector<16xf32> to vector<16x1xf32>
    %cst_33 = arith.constant 3.200000e+01 : f32
    %140 = vector.broadcast %cst_33 : f32 to vector<16x1xf32>
    %141 = arith.divf %139, %140 : vector<16x1xf32>
    %142 = vector.broadcast %141 : vector<16x1xf32> to vector<16x32xf32>
    %143 = arith.subf %137, %142 : vector<16x32xf32>
    %144 = arith.mulf %143, %143 : vector<16x32xf32>
    %cst_34 = arith.constant dense<0.000000e+00> : vector<16xf32>
    %145 = vector.multi_reduction <add>, %144, %cst_34 [1] : vector<16x32xf32> to vector<16xf32>
    %146 = vector.shape_cast %145 : vector<16xf32> to vector<16x1xf32>
    %cst_35 = arith.constant 3.200000e+01 : f32
    %147 = vector.broadcast %cst_35 : f32 to vector<16x1xf32>
    %148 = arith.divf %146, %147 : vector<16x1xf32>
    %cst_36 = arith.constant 9.99999974E-6 : f32
    %149 = vector.broadcast %cst_36 : f32 to vector<16x1xf32>
    %150 = arith.addf %148, %149 : vector<16x1xf32>
    %151 = math.rsqrt %150 : vector<16x1xf32>
    %152 = vector.broadcast %151 : vector<16x1xf32> to vector<16x32xf32>
    %153 = arith.mulf %143, %152 : vector<16x32xf32>
    %154 = vector.broadcast %23 : vector<1x32xf32> to vector<16x32xf32>
    %155 = arith.mulf %153, %154 : vector<16x32xf32>
    %156 = vector.broadcast %24 : vector<1x32xf32> to vector<16x32xf32>
    %157 = arith.addf %155, %156 : vector<16x32xf32>
    %cst_37 = arith.constant dense<0.000000e+00> : vector<16x32xf32>
    %158 = tpu.matmul %157, %11, %cst_37 {dimension_numbers = #tpu.dot_dimension_numbers<[1], [0], [0], [1], [0, 0, 1, 1], [], []>} : vector<16x32xf32>, vector<32x32xf32>, vector<16x32xf32> -> vector<16x32xf32>
    %159 = vector.broadcast %19 : vector<1x32xf32> to vector<16x32xf32>
    %160 = arith.addf %158, %159 : vector<16x32xf32>
    %cst_38 = arith.constant 0.000000e+00 : f32
    %161 = vector.broadcast %cst_38 : f32 to vector<16x32xf32>
    %162 = arith.maximumf %160, %161 : vector<16x32xf32>
    %cst_39 = arith.constant dense<0.000000e+00> : vector<16x32xf32>
    %163 = tpu.matmul %162, %13, %cst_39 {dimension_numbers = #tpu.dot_dimension_numbers<[1], [0], [0], [1], [0, 0, 1, 1], [], []>} : vector<16x32xf32>, vector<32x32xf32>, vector<16x32xf32> -> vector<16x32xf32>
    %164 = vector.broadcast %20 : vector<1x32xf32> to vector<16x32xf32>
    %165 = arith.addf %163, %164 : vector<16x32xf32>
    %166 = arith.addf %157, %165 : vector<16x32xf32>
    %cst_40 = arith.constant dense<0.000000e+00> : vector<16xf32>
    %167 = vector.multi_reduction <add>, %166, %cst_40 [1] : vector<16x32xf32> to vector<16xf32>
    %168 = vector.shape_cast %167 : vector<16xf32> to vector<16x1xf32>
    %cst_41 = arith.constant 3.200000e+01 : f32
    %169 = vector.broadcast %cst_41 : f32 to vector<16x1xf32>
    %170 = arith.divf %168, %169 : vector<16x1xf32>
    %171 = vector.broadcast %170 : vector<16x1xf32> to vector<16x32xf32>
    %172 = arith.subf %166, %171 : vector<16x32xf32>
    %173 = arith.mulf %172, %172 : vector<16x32xf32>
    %cst_42 = arith.constant dense<0.000000e+00> : vector<16xf32>
    %174 = vector.multi_reduction <add>, %173, %cst_42 [1] : vector<16x32xf32> to vector<16xf32>
    %175 = vector.shape_cast %174 : vector<16xf32> to vector<16x1xf32>
    %cst_43 = arith.constant 3.200000e+01 : f32
    %176 = vector.broadcast %cst_43 : f32 to vector<16x1xf32>
    %177 = arith.divf %175, %176 : vector<16x1xf32>
    %cst_44 = arith.constant 9.99999974E-6 : f32
    %178 = vector.broadcast %cst_44 : f32 to vector<16x1xf32>
    %179 = arith.addf %177, %178 : vector<16x1xf32>
    %180 = math.rsqrt %179 : vector<16x1xf32>
    %181 = vector.broadcast %180 : vector<16x1xf32> to vector<16x32xf32>
    %182 = arith.mulf %172, %181 : vector<16x32xf32>
    %183 = vector.broadcast %25 : vector<1x32xf32> to vector<16x32xf32>
    %184 = arith.mulf %182, %183 : vector<16x32xf32>
    %185 = vector.broadcast %26 : vector<1x32xf32> to vector<16x32xf32>
    %186 = arith.addf %184, %185 : vector<16x32xf32>
    %c0_45 = arith.constant 0 : index
    %c0_46 = arith.constant 0 : index
    %187 = vector.load %arg4[%c0_45, %c0_46] : memref<16x32xf32, #tpu.memory_space<vmem>>, vector<16x32xf32>
    tpu.vector_store %arg4[%c0_45, %c0_46], %186 {strides = array<i32>} : memref<16x32xf32, #tpu.memory_space<vmem>>, vector<16x32xf32>,
    return
  }
}

</mosaic_0001>

<llo_original>
// kernel: _forward_impl.1
$region0: #{_forward_impl.1}
  #allocation0 [shape = 'u32[]', space=smem, size = 0x4, offset = 0x4, fixed_abs, tag = 'smem constant byte address 0x4 - core index']
  #allocation1 [shape = 'u32[72,128]{1,0:T(1,128)}', space=vmem, size = 0x9000, scoped, tag = 'internal scratch']
  %s0 = inlined_call_operand.vmem [shape: f32[16,32], index: 0, kind: input, shape index: {}]
  %s1 = inlined_call_operand.vmem [shape: f32[16,40], index: 1, kind: input, shape index: {}]
  %s2 = inlined_call_operand.vmem [shape: f32[2,64,64], index: 2, kind: input, shape index: {}]
  %s3 = inlined_call_operand.vmem [shape: f32[176,96], index: 3, kind: input, shape index: {}]
  %s4 = inlined_call_operand.vmem [shape: f32[16,32], index: 4, kind: output, shape index: {}]
  %s5 = sld [smem:[#allocation0]]
  $region26: #{_forward_impl.1} parent=0
    _
  %s7 = ssub.s32 1, %s5
  %s8 = scalar_select 0, %s7, %s5
  // Predicated region
  $region2: #{_forward_impl.1} parent=0 // pred_check
    _
  $region3: #{_forward_impl.1} parent=0 // pred_check_branch
    %10 = sbr.rel (0) target = $region5
  $region4: #{_forward_impl.1} parent=0 // pred_region
    _
  $region5: #{_forward_impl.1} parent=0 // pred_fallthru
    _
  // Predicated region
  $region6: #{_forward_impl.1} parent=0 // pred_check
    _
  $region7: #{_forward_impl.1} parent=0 // pred_check_branch
    %12 = sbr.rel (0) target = $region9
  $region8: #{_forward_impl.1} parent=0 // pred_region
    _
  $region9: #{_forward_impl.1} parent=0 // pred_fallthru
    _
  // Predicated region
  $region10: #{_forward_impl.1} parent=0 // pred_check
    _
  $region11: #{_forward_impl.1} parent=0 // pred_check_branch
    %14 = sbr.rel (0) target = $region13
  $region12: #{_forward_impl.1} parent=0 // pred_region
    _
  $region13: #{_forward_impl.1} parent=0 // pred_fallthru
    _
  // Predicated region
  $region14: #{_forward_impl.1} parent=0 // pred_check
    _
  $region15: #{_forward_impl.1} parent=0 // pred_check_branch
    %16 = sbr.rel (0) target = $region17
  $region16: #{_forward_impl.1} parent=0 // pred_region
    _
  $region17: #{_forward_impl.1} parent=0 // pred_fallthru
    _
  %v17 = vld [vmem:[%s0] sm:$0xff]
  %v18 = vld [vmem:[%s0 + $0x8] sm:$0xff]
  %v19 = vld [vmem:[%s1] sm:$0xff]
  %v20 = vld [vmem:[%s1 + $0x8] sm:$0xff]
  %v21 = vld [vmem:[%s2] sm:$0xff]
  %v22 = vld [vmem:[%s2 + $0x8] sm:$0xff]
  %v23 = vld [vmem:[%s2 + $0x10] sm:$0xff]
  %v24 = vld [vmem:[%s2 + $0x18] sm:$0xff]
  %v25 = vld [vmem:[%s2 + $0x20] sm:$0xff]
  %v26 = vld [vmem:[%s2 + $0x28] sm:$0xff]
  %v27 = vld [vmem:[%s2 + $0x30] sm:$0xff]
  %v28 = vld [vmem:[%s2 + $0x38] sm:$0xff]
  %s29 = scalar_lea.vmem %s2, 64
  %v30 = vld [vmem:[%s29] sm:$0xff]
  %v31 = vld [vmem:[%s29 + $0x8] sm:$0xff]
  %v32 = vld [vmem:[%s29 + $0x10] sm:$0xff]
  %v33 = vld [vmem:[%s29 + $0x18] sm:$0xff]
  %v34 = vld [vmem:[%s29 + $0x20] sm:$0xff]
  %v35 = vld [vmem:[%s29 + $0x28] sm:$0xff]
  %v36 = vld [vmem:[%s29 + $0x30] sm:$0xff]
  %v37 = vld [vmem:[%s29 + $0x38] sm:$0xff]
  %v38 = vld [vmem:[%s3] sm:$0xff]
  %v39 = vld [vmem:[%s3 + $0x8] sm:$0xff]
  %v40 = vld [vmem:[%s3 + $0x10] sm:$0xff]
  %v41 = vld [vmem:[%s3 + $0x18] sm:$0xff]
  %v42 = vld [vmem:[%s3 + $0x20] sm:$0xff]
  %v43 = vld [vmem:[%s3 + $0x28] sm:$0xff]
  %v44 = vld [vmem:[%s3 + $0x30] sm:$0xff]
  %v45 = vld [vmem:[%s3 + $0x38] sm:$0xff]
  %v46 = vld [vmem:[%s3 + $0x40] sm:$0xff]
  %v47 = vld [vmem:[%s3 + $0x48] sm:$0xff]
  %v48 = vld [vmem:[%s3 + $0x50] sm:$0xff]
  %v49 = vld [vmem:[%s3 + $0x58] sm:$0xff]
  %v50 = vld [vmem:[%s3 + $0x60] sm:$0xff]
  %v51 = vld [vmem:[%s3 + $0x68] sm:$0xff]
  %v52 = vld [vmem:[%s3 + $0x70] sm:$0xff]
  %v53 = vld [vmem:[%s3 + $0x78] sm:$0xff]
  %v54 = vld [vmem:[%s3 + $0x80] sm:$0xff]
  %v55 = vld [vmem:[%s3 + $0x88] sm:$0xff]
  %v56 = vld [vmem:[%s3 + $0x90] sm:$0xff]
  %v57 = vld [vmem:[%s3 + $0x98] sm:$0xff]
  %v58 = vld [vmem:[%s3 + $0xa0] sm:$0xff]
  %v59 = vld [vmem:[%s3 + $0xa8] sm:$0xff]
  %v60 = vperm.slane %v59, 0
  %vm61 = vcmask 261120
  %v63 = vsel %vm61, %v17, 0
  %v66 = vsel %vm61, %v18, 0
  %68 = vmatpush.msra.mxu0 0.0
  %69 = vmatpush.msra.mxu0 0.0
  %70 = vmatpush.msra.mxu0 0.0
  %71 = vmatpush.msra.mxu0 0.0
  %72 = vmatpush.msra.mxu0 0.0
  %73 = vmatpush.msra.mxu0 0.0
  %74 = vmatpush.msra.mxu0 0.0
  %75 = vmatpush.msra.mxu0 0.0
  %76 = vmatpush.msra.mxu0 0.0
  %77 = vmatpush.msra.mxu0 0.0
  %78 = vmatpush.msra.mxu0 0.0
  %79 = vmatpush.msra.mxu0 0.0
  %80 = vmatpush.msra.mxu0 %v41
  %81 = vmatpush.msra.mxu0 %v40
  %82 = vmatpush.msra.mxu0 %v39
  %83 = vmatpush.msra.mxu0 %v38
  %84 = vmatmul.f32.gmra.mxu0 %v63
  %v85 = vpop.f32.mrf.mxu0
  %v86 = vadd.f32 %v60, %v85
  %87 = vmatmul.f32.gmra.mxu0 %v66
  %v88 = vpop.f32.mrf.mxu0
  %v89 = vadd.f32 %v60, %v88
  %90 = vdwg.mxu0
  %93 = vrot.lane.b32.xlu0 %v86, 120
  %v94 = vpop.permute.xlu0 %93
  %95 = vrot.lane.b32.xlu0 %v89, 120
  %v96 = vpop.permute.xlu0 %95
  %97 = vrot.lane.b32.xlu0 %v86, 112
  %v98 = vpop.permute.xlu0 %97
  %99 = vrot.lane.b32.xlu0 %v89, 112
  %v100 = vpop.permute.xlu0 %99
  %101 = vrot.lane.b32.xlu0 %v86, 104
  %v102 = vpop.permute.xlu0 %101
  %103 = vrot.lane.b32.xlu0 %v89, 104
  %v104 = vpop.permute.xlu0 %103
  %105 = vrot.lane.b32.xlu0 %v86, 96
  %v106 = vpop.permute.xlu0 %105
  %107 = vrot.lane.b32.xlu0 %v89, 96
  %v108 = vpop.permute.xlu0 %107
  %109 = vrot.lane.b32.xlu0 %v94, 96
  %v110 = vpop.permute.xlu0 %109
  %111 = vrot.lane.b32.xlu0 %v96, 96
  %v112 = vpop.permute.xlu0 %111
  %113 = vrot.lane.b32.xlu0 %v98, 96
  %v114 = vpop.permute.xlu0 %113
  %115 = vrot.lane.b32.xlu0 %v100, 96
  %v116 = vpop.permute.xlu0 %115
  %117 = vrot.lane.b32.xlu0 %v102, 96
  %v118 = vpop.permute.xlu0 %117
  %119 = vrot.lane.b32.xlu0 %v104, 96
  %v120 = vpop.permute.xlu0 %119
  %vm121 = vcmask 64512
  %v122 = vsel %vm121, %v86, 0
  %v124 = vsel %vm121, %v89, 0
  %v126 = vsel %vm121, %v94, 0
  %v128 = vsel %vm121, %v96, 0
  %v130 = vsel %vm121, %v98, 0
  %v132 = vsel %vm121, %v100, 0
  %v134 = vsel %vm121, %v102, 0
  %v136 = vsel %vm121, %v104, 0
  %v138 = vsel %vm121, %v106, 0
  %v140 = vsel %vm121, %v108, 0
  %v142 = vsel %vm121, %v110, 0
  %v144 = vsel %vm121, %v112, 0
  %v146 = vsel %vm121, %v114, 0
  %v148 = vsel %vm121, %v116, 0
  %v150 = vsel %vm121, %v118, 0
  %v152 = vsel %vm121, %v120, 0
  %154 = vmatpush.xpose.msra.mxu0 0.0
  %155 = vmatpush.xpose.msra.mxu0 0.0
  %156 = vmatpush.xpose.msra.mxu0 0.0
  %157 = vmatpush.xpose.msra.mxu0 0.0
  %158 = vmatpush.xpose.msra.mxu0 0.0
  %159 = vmatpush.xpose.msra.mxu0 0.0
  %160 = vmatpush.xpose.msra.mxu0 0.0
  %161 = vmatpush.xpose.msra.mxu0 0.0
  %162 = vmatpush.xpose.msra.mxu0 %v152
  %163 = vmatpush.xpose.msra.mxu0 %v150
  %164 = vmatpush.xpose.msra.mxu0 %v148
  %165 = vmatpush.xpose.msra.mxu0 %v146
  %166 = vmatpush.xpose.msra.mxu0 %v144
  %167 = vmatpush.xpose.msra.mxu0 %v142
  %168 = vmatpush.xpose.msra.mxu0 %v140
  %169 = vmatpush.xpose.msra.mxu0 %v138
  %170 = vmatmul.f32.gmra.mxu0 %v122
  %v171 = vpop.f32.mrf.mxu0
  %v172 = vadd.f32 0.0, %v171
  %173 = vmatmul.f32.gmra.mxu0 %v124
  %v174 = vpop.f32.mrf.mxu0
  %v175 = vadd.f32 0.0, %v174
  %176 = vmatmul.f32.gmra.mxu0 %v126
  %v177 = vpop.f32.mrf.mxu0
  %v178 = vadd.f32 0.0, %v177
  %179 = vmatmul.f32.gmra.mxu0 %v128
  %v180 = vpop.f32.mrf.mxu0
  %v181 = vadd.f32 0.0, %v180
  %182 = vmatmul.f32.gmra.mxu0 %v130
  %v183 = vpop.f32.mrf.mxu0
  %v184 = vadd.f32 0.0, %v183
  %185 = vmatmul.f32.gmra.mxu0 %v132
  %v186 = vpop.f32.mrf.mxu0
  %v187 = vadd.f32 0.0, %v186
  %188 = vmatmul.f32.gmra.mxu0 %v134
  %v189 = vpop.f32.mrf.mxu0
  %v190 = vadd.f32 0.0, %v189
  %191 = vmatmul.f32.gmra.mxu0 %v136
  %v192 = vpop.f32.mrf.mxu0
  %v193 = vadd.f32 0.0, %v192
  %194 = vdwg.mxu0
  %v195 = vmul.f32 %v172, 0.35355338
  %v196 = vmul.f32 %v175, 0.35355338
  %v197 = vmul.f32 %v178, 0.35355338
  %v198 = vmul.f32 %v181, 0.35355338
  %v199 = vmul.f32 %v184, 0.35355338
  %v200 = vmul.f32 %v187, 0.35355338
  %v201 = vmul.f32 %v190, 0.35355338
  %v202 = vmul.f32 %v193, 0.35355338
  %v203 = vadd.f32 %v195, %v21
  %v204 = vadd.f32 %v196, %v22
  %v205 = vadd.f32 %v197, %v23
  %v206 = vadd.f32 %v198, %v24
  %v207 = vadd.f32 %v199, %v25
  %v208 = vadd.f32 %v200, %v26
  %v209 = vadd.f32 %v201, %v27
  %v210 = vadd.f32 %v202, %v28
  %vm211 = vcmask 523264
  %v212 = vsel %vm211, %v203, -inf
  %213 = vmax.xlane.f32.xlu0 %v212
  %v214 = vpop.xlane.xlu0 %213
  %v215 = vsel %vm211, %v204, -inf
  %216 = vmax.xlane.f32.xlu0 %v215
  %v217 = vpop.xlane.xlu0 %216
  %v218 = vsel %vm211, %v205, -inf
  %219 = vmax.xlane.f32.xlu0 %v218
  %v220 = vpop.xlane.xlu0 %219
  %v221 = vsel %vm211, %v206, -inf
  %222 = vmax.xlane.f32.xlu0 %v221
  %v223 = vpop.xlane.xlu0 %222
  %v224 = vsel %vm211, %v207, -inf
  %225 = vmax.xlane.f32.xlu0 %v224
  %v226 = vpop.xlane.xlu0 %225
  %v227 = vsel %vm211, %v208, -inf
  %228 = vmax.xlane.f32.xlu0 %v227
  %v229 = vpop.xlane.xlu0 %228
  %v230 = vsel %vm211, %v209, -inf
  %231 = vmax.xlane.f32.xlu0 %v230
  %v232 = vpop.xlane.xlu0 %231
  %v233 = vsel %vm211, %v210, -inf
  %234 = vmax.xlane.f32.xlu0 %v233
  %v235 = vpop.xlane.xlu0 %234
  %v236 = vsub.f32 %v203, %v214
  %v237 = vsub.f32 %v204, %v217
  %v238 = vsub.f32 %v205, %v220
  %v239 = vsub.f32 %v206, %v223
  %v240 = vsub.f32 %v207, %v226
  %v241 = vsub.f32 %v208, %v229
  %v242 = vsub.f32 %v209, %v232
  %v243 = vsub.f32 %v210, %v235
  %v244 = vmul.f32 %v236, 1.442695
  %v245 = vpow.pop %v244
  %v246 = vmul.f32 %v237, 1.442695
  %v247 = vpow.pop %v246
  %v248 = vmul.f32 %v238, 1.442695
  %v249 = vpow.pop %v248
  %v250 = vmul.f32 %v239, 1.442695
  %v251 = vpow.pop %v250
  %v252 = vmul.f32 %v240, 1.442695
  %v253 = vpow.pop %v252
  %v254 = vmul.f32 %v241, 1.442695
  %v255 = vpow.pop %v254
  %v256 = vmul.f32 %v242, 1.442695
  %v257 = vpow.pop %v256
  %v258 = vmul.f32 %v243, 1.442695
  %v259 = vpow.pop %v258
  %v260 = vsel %vm211, %v245, 0.0
  %261 = vadd.xlane.f32.xlu0 %v260
  %v262 = vpop.xlane.xlu0 %261
  %v263 = vsel %vm211, %v247, 0.0
  %264 = vadd.xlane.f32.xlu0 %v263
  %v265 = vpop.xlane.xlu0 %264
  %v266 = vsel %vm211, %v249, 0.0
  %267 = vadd.xlane.f32.xlu0 %v266
  %v268 = vpop.xlane.xlu0 %267
  %v269 = vsel %vm211, %v251, 0.0
  %270 = vadd.xlane.f32.xlu0 %v269
  %v271 = vpop.xlane.xlu0 %270
  %v272 = vsel %vm211, %v253, 0.0
  %273 = vadd.xlane.f32.xlu0 %v272
  %v274 = vpop.xlane.xlu0 %273
  %v275 = vsel %vm211, %v255, 0.0
  %276 = vadd.xlane.f32.xlu0 %v275
  %v277 = vpop.xlane.xlu0 %276
  %v278 = vsel %vm211, %v257, 0.0
  %279 = vadd.xlane.f32.xlu0 %v278
  %v280 = vpop.xlane.xlu0 %279
  %v281 = vsel %vm211, %v259, 0.0
  %282 = vadd.xlane.f32.xlu0 %v281
  %v283 = vpop.xlane.xlu0 %282
  %v284 = vrcp.pop %v262
  %v285 = vmul.f32 %v262, %v284
  %v286 = vsub.f32 1.0, %v285
  %v287 = vmul.f32 %v284, %v286
  %v288 = vadd.f32 %v284, %v287
  %vm289 = vweird.f32 %v262
  %vm290 = vweird.f32 %v284
  %vm291 = vmor %vm289, %vm290
  %v292 = vsel %vm291, %v284, %v288
  %v293 = vand.u32 2147483647, %v262
  %vm294 = vcmp.eq.f32.partialorder %v293, 8.507059e+37
  %v295 = vand.u32 %v262, 2147483648
  %v296 = vor.u32 1.1754944e-38, %v295
  %v297 = vsel %vm294, %v296, %v292
  %v298 = vrcp.pop %v265
  %v299 = vmul.f32 %v265, %v298
  %v300 = vsub.f32 1.0, %v299
  %v301 = vmul.f32 %v298, %v300
  %v302 = vadd.f32 %v298, %v301
  %vm303 = vweird.f32 %v265
  %vm304 = vweird.f32 %v298
  %vm305 = vmor %vm303, %vm304
  %v306 = vsel %vm305, %v298, %v302
  %v307 = vand.u32 2147483647, %v265
  %vm308 = vcmp.eq.f32.partialorder %v307, 8.507059e+37
  %v309 = vand.u32 %v265, 2147483648
  %v310 = vor.u32 1.1754944e-38, %v309
  %v311 = vsel %vm308, %v310, %v306
  %v312 = vrcp.pop %v268
  %v313 = vmul.f32 %v268, %v312
  %v314 = vsub.f32 1.0, %v313
  %v315 = vmul.f32 %v312, %v314
  %v316 = vadd.f32 %v312, %v315
  %vm317 = vweird.f32 %v268
  %vm318 = vweird.f32 %v312
  %vm319 = vmor %vm317, %vm318
  %v320 = vsel %vm319, %v312, %v316
  %v321 = vand.u32 2147483647, %v268
  %vm322 = vcmp.eq.f32.partialorder %v321, 8.507059e+37
  %v323 = vand.u32 %v268, 2147483648
  %v324 = vor.u32 1.1754944e-38, %v323
  %v325 = vsel %vm322, %v324, %v320
  %v326 = vrcp.pop %v271
  %v327 = vmul.f32 %v271, %v326
  %v328 = vsub.f32 1.0, %v327
  %v329 = vmul.f32 %v326, %v328
  %v330 = vadd.f32 %v326, %v329
  %vm331 = vweird.f32 %v271
  %vm332 = vweird.f32 %v326
  %vm333 = vmor %vm331, %vm332
  %v334 = vsel %vm333, %v326, %v330
  %v335 = vand.u32 2147483647, %v271
  %vm336 = vcmp.eq.f32.partialorder %v335, 8.507059e+37
  %v337 = vand.u32 %v271, 2147483648
  %v338 = vor.u32 1.1754944e-38, %v337
  %v339 = vsel %vm336, %v338, %v334
  %v340 = vrcp.pop %v274
  %v341 = vmul.f32 %v274, %v340
  %v342 = vsub.f32 1.0, %v341
  %v343 = vmul.f32 %v340, %v342
  %v344 = vadd.f32 %v340, %v343
  %vm345 = vweird.f32 %v274
  %vm346 = vweird.f32 %v340
  %vm347 = vmor %vm345, %vm346
  %v348 = vsel %vm347, %v340, %v344
  %v349 = vand.u32 2147483647, %v274
  %vm350 = vcmp.eq.f32.partialorder %v349, 8.507059e+37
  %v351 = vand.u32 %v274, 2147483648
  %v352 = vor.u32 1.1754944e-38, %v351
  %v353 = vsel %vm350, %v352, %v348
  %v354 = vrcp.pop %v277
  %v355 = vmul.f32 %v277, %v354
  %v356 = vsub.f32 1.0, %v355
  %v357 = vmul.f32 %v354, %v356
  %v358 = vadd.f32 %v354, %v357
  %vm359 = vweird.f32 %v277
  %vm360 = vweird.f32 %v354
  %vm361 = vmor %vm359, %vm360
  %v362 = vsel %vm361, %v354, %v358
  %v363 = vand.u32 2147483647, %v277
  %vm364 = vcmp.eq.f32.partialorder %v363, 8.507059e+37
  %v365 = vand.u32 %v277, 2147483648
  %v366 = vor.u32 1.1754944e-38, %v365
  %v367 = vsel %vm364, %v366, %v362
  %v368 = vrcp.pop %v280
  %v369 = vmul.f32 %v280, %v368
  %v370 = vsub.f32 1.0, %v369
  %v371 = vmul.f32 %v368, %v370
  %v372 = vadd.f32 %v368, %v371
  %vm373 = vweird.f32 %v280
  %vm374 = vweird.f32 %v368
  %vm375 = vmor %vm373, %vm374
  %v376 = vsel %vm375, %v368, %v372
  %v377 = vand.u32 2147483647, %v280
  %vm378 = vcmp.eq.f32.partialorder %v377, 8.507059e+37
  %v379 = vand.u32 %v280, 2147483648
  %v380 = vor.u32 1.1754944e-38, %v379
  %v381 = vsel %vm378, %v380, %v376
  %v382 = vrcp.pop %v283
  %v383 = vmul.f32 %v283, %v382
  %v384 = vsub.f32 1.0, %v383
  %v385 = vmul.f32 %v382, %v384
  %v386 = vadd.f32 %v382, %v385
  %vm387 = vweird.f32 %v283
  %vm388 = vweird.f32 %v382
  %vm389 = vmor %vm387, %vm388
  %v390 = vsel %vm389, %v382, %v386
  %v391 = vand.u32 2147483647, %v283
  %vm392 = vcmp.eq.f32.partialorder %v391, 8.507059e+37
  %v393 = vand.u32 %v283, 2147483648
  %v394 = vor.u32 1.1754944e-38, %v393
  %v395 = vsel %vm392, %v394, %v390
  %v396 = vmul.f32 %v245, %v297
  %v397 = vmul.f32 %v247, %v311
  %v398 = vmul.f32 %v249, %v325
  %v399 = vmul.f32 %v251, %v339
  %v400 = vmul.f32 %v253, %v353
  %v401 = vmul.f32 %v255, %v367
  %v402 = vmul.f32 %v257, %v381
  %v403 = vmul.f32 %v259, %v395
  %404 = vrot.lane.b32.xlu0 %v86, 64
  %v405 = vpop.permute.xlu0 %404
  %406 = vrot.lane.b32.xlu0 %v89, 64
  %v407 = vpop.permute.xlu0 %406
  %408 = vrot.lane.b32.xlu0 %v94, 64
  %v409 = vpop.permute.xlu0 %408
  %410 = vrot.lane.b32.xlu0 %v96, 64
  %v411 = vpop.permute.xlu0 %410
  %412 = vrot.lane.b32.xlu0 %v98, 64
  %v413 = vpop.permute.xlu0 %412
  %414 = vrot.lane.b32.xlu0 %v100, 64
  %v415 = vpop.permute.xlu0 %414
  %416 = vrot.lane.b32.xlu0 %v102, 64
  %v417 = vpop.permute.xlu0 %416
  %418 = vrot.lane.b32.xlu0 %v104, 64
  %v419 = vpop.permute.xlu0 %418
  %v429 = vsel %vm211, %v396, 0
  %v432 = vsel %vm211, %v397, 0
  %v435 = vsel %vm211, %v398, 0
  %v438 = vsel %vm211, %v399, 0
  %v441 = vsel %vm211, %v400, 0
  %v444 = vsel %vm211, %v401, 0
  %v447 = vsel %vm211, %v402, 0
  %v450 = vsel %vm211, %v403, 0
  %452 = vmatpush.msra.mxu0 0.0
  %453 = vmatpush.msra.mxu0 0.0
  %454 = vmatpush.msra.mxu0 0.0
  %455 = vmatpush.msra.mxu0 0.0
  %456 = vmatpush.msra.mxu0 0.0
  %457 = vmatpush.msra.mxu0 0.0
  %458 = vmatpush.msra.mxu0 0.0
  %459 = vmatpush.msra.mxu0 0.0
  %460 = vmatpush.msra.mxu0 %v419
  %461 = vmatpush.msra.mxu0 %v417
  %462 = vmatpush.msra.mxu0 %v415
  %463 = vmatpush.msra.mxu0 %v413
  %464 = vmatpush.msra.mxu0 %v411
  %465 = vmatpush.msra.mxu0 %v409
  %466 = vmatpush.msra.mxu0 %v407
  %467 = vmatpush.msra.mxu0 %v405
  %468 = vmatmul.f32.gmra.mxu0 %v429
  %v469 = vpop.f32.mrf.mxu0
  %v470 = vadd.f32 0.0, %v469
  %471 = vmatmul.f32.gmra.mxu0 %v432
  %v472 = vpop.f32.mrf.mxu0
  %v473 = vadd.f32 0.0, %v472
  %474 = vmatmul.f32.gmra.mxu0 %v435
  %v475 = vpop.f32.mrf.mxu0
  %v476 = vadd.f32 0.0, %v475
  %477 = vmatmul.f32.gmra.mxu0 %v438
  %v478 = vpop.f32.mrf.mxu0
  %v479 = vadd.f32 0.0, %v478
  %480 = vmatmul.f32.gmra.mxu0 %v441
  %v481 = vpop.f32.mrf.mxu0
  %v482 = vadd.f32 0.0, %v481
  %483 = vmatmul.f32.gmra.mxu0 %v444
  %v484 = vpop.f32.mrf.mxu0
  %v485 = vadd.f32 0.0, %v484
  %486 = vmatmul.f32.gmra.mxu0 %v447
  %v487 = vpop.f32.mrf.mxu0
  %v488 = vadd.f32 0.0, %v487
  %489 = vmatmul.f32.gmra.mxu0 %v450
  %v490 = vpop.f32.mrf.mxu0
  %v491 = vadd.f32 0.0, %v490
  %492 = vdwg.mxu0
  %495 = vrot.lane.b32.xlu0 %v476, 8
  %v496 = vpop.permute.xlu0 %495
  %497 = vrot.lane.b32.xlu0 %v479, 8
  %v498 = vpop.permute.xlu0 %497
  %503 = vrot.lane.b32.xlu0 %v482, 16
  %v504 = vpop.permute.xlu0 %503
  %505 = vrot.lane.b32.xlu0 %v485, 16
  %v506 = vpop.permute.xlu0 %505
  %511 = vrot.lane.b32.xlu0 %v488, 24
  %v512 = vpop.permute.xlu0 %511
  %513 = vrot.lane.b32.xlu0 %v491, 24
  %v514 = vpop.permute.xlu0 %513
  %v517 = vsel %vm121, %v470, %v496
  %v518 = vsel %vm121, %v473, %v498
  %vm519 = vcmask 130048
  %v520 = vsel %vm519, %v517, %v504
  %v521 = vsel %vm519, %v518, %v506
  %vm522 = vcmask 195584
  %v523 = vsel %vm522, %v520, %v512
  %v524 = vsel %vm522, %v521, %v514
  %v525 = vperm.slane %v59, 2
  %v527 = vsel %vm61, %v523, 0
  %v530 = vsel %vm61, %v524, 0
  %532 = vmatpush.msra.mxu0 0.0
  %533 = vmatpush.msra.mxu0 0.0
  %534 = vmatpush.msra.mxu0 0.0
  %535 = vmatpush.msra.mxu0 0.0
  %536 = vmatpush.msra.mxu0 0.0
  %537 = vmatpush.msra.mxu0 0.0
  %538 = vmatpush.msra.mxu0 0.0
  %539 = vmatpush.msra.mxu0 0.0
  %540 = vmatpush.msra.mxu0 0.0
  %541 = vmatpush.msra.mxu0 0.0
  %542 = vmatpush.msra.mxu0 0.0
  %543 = vmatpush.msra.mxu0 0.0
  %544 = vmatpush.msra.mxu0 %v54
  %545 = vmatpush.msra.mxu0 %v53
  %546 = vmatpush.msra.mxu0 %v52
  %547 = vmatpush.msra.mxu0 %v51
  %548 = vmatmul.f32.gmra.mxu0 %v527
  %v549 = vpop.f32.mrf.mxu0
  %v550 = vadd.f32 %v525, %v549
  %551 = vmatmul.f32.gmra.mxu0 %v530
  %v552 = vpop.f32.mrf.mxu0
  %v553 = vadd.f32 %v525, %v552
  %554 = vdwg.mxu0
  %v555 = vadd.f32 %v17, %v550
  %v556 = vadd.f32 %v18, %v553
  %v557 = vsel %vm61, %v555, 0.0
  %558 = vadd.xlane.f32.xlu0 %v557
  %v559 = vpop.xlane.xlu0 %558
  %v560 = vsel %vm61, %v556, 0.0
  %561 = vadd.xlane.f32.xlu0 %v560
  %v562 = vpop.xlane.xlu0 %561
  %v563 = vrcp.pop 32.0
  %v564 = vmul.f32 32.0, %v563
  %v565 = vsub.f32 1.0, %v564
  %v566 = vmul.f32 %v563, %v565
  %v567 = vadd.f32 %v563, %v566
  %vm568 = vweird.f32 %v563
  %v569 = vsel %vm568, %v563, %v567
  %v570 = vmul.f32 %v559, %v569
  %v571 = vmul.f32 %v562, %v569
  %v572 = vsub.f32 %v555, %v570
  %v573 = vsub.f32 %v556, %v571
  %v574 = vmul.f32 %v572, %v572
  %v575 = vmul.f32 %v573, %v573
  %v576 = vsel %vm61, %v574, 0.0
  %577 = vadd.xlane.f32.xlu0 %v576
  %v578 = vpop.xlane.xlu0 %577
  %v579 = vsel %vm61, %v575, 0.0
  %580 = vadd.xlane.f32.xlu0 %v579
  %v581 = vpop.xlane.xlu0 %580
  %v582 = vmul.f32 %v578, %v569
  %v583 = vmul.f32 %v581, %v569
  %v584 = vadd.f32 %v582, 1e-05
  %v585 = vadd.f32 %v583, 1e-05
  %v586 = vrsqrt.pop %v584
  %v587 = vmul.f32 %v586, %v584
  %v588 = vmul.f32 %v587, %v586
  %v589 = vmul.f32 0.5, %v588
  %v590 = vsub.f32 1.5, %v589
  %v591 = vmul.f32 %v586, %v590
  %vm592 = vweird.f32 %v584
  %vm593 = vweird.f32 %v586
  %vm594 = vmor %vm592, %vm593
  %v595 = vsel %vm594, %v586, %v591
  %v596 = vrsqrt.pop %v585
  %v597 = vmul.f32 %v596, %v585
  %v598 = vmul.f32 %v597, %v596
  %v599 = vmul.f32 0.5, %v598
  %v600 = vsub.f32 1.5, %v599
  %v601 = vmul.f32 %v596, %v600
  %vm602 = vweird.f32 %v585
  %vm603 = vweird.f32 %v596
  %vm604 = vmor %vm602, %vm603
  %v605 = vsel %vm604, %v596, %v601
  %v606 = vmul.f32 %v572, %v595
  %v607 = vmul.f32 %v573, %v605
  %v608 = vperm.slane %v59, 3
  %610 = vrot.lane.b32.xlu0 %v608, 96
  %v611 = vpop.permute.xlu0 %610
  %v613 = vmul.f32 %v606, %v611
  %v614 = vmul.f32 %v607, %v611
  %615 = vrot.lane.b32.xlu0 %v608, 64
  %v616 = vpop.permute.xlu0 %615
  %v618 = vadd.f32 %v613, %v616
  %v619 = vadd.f32 %v614, %v616
  %622 = vrot.lane.b32.xlu0 %v19, 32
  %v623 = vpop.permute.xlu0 %622
  %624 = vrot.lane.b32.xlu0 %v20, 32
  %v625 = vpop.permute.xlu0 %624
  %v628 = vsel %vm61, %v618, %v623
  %v629 = vsel %vm61, %v619, %v625
  %v630 = vperm.slane %v59, 1
  %vm631 = vcmask 588800
  %v633 = vsel %vm631, %v628, 0
  %v636 = vsel %vm631, %v629, 0
  %638 = vmatpush.msra.mxu0 0.0
  %639 = vmatpush.msra.mxu0 0.0
  %640 = vmatpush.msra.mxu0 0.0
  %641 = vmatpush.msra.mxu0 0.0
  %642 = vmatpush.msra.mxu0 0.0
  %643 = vmatpush.msra.mxu0 0.0
  %644 = vmatpush.msra.mxu0 0.0
  %645 = vmatpush.msra.mxu0 %v50
  %646 = vmatpush.msra.mxu0 %v49
  %647 = vmatpush.msra.mxu0 %v48
  %648 = vmatpush.msra.mxu0 %v47
  %649 = vmatpush.msra.mxu0 %v46
  %650 = vmatpush.msra.mxu0 %v45
  %651 = vmatpush.msra.mxu0 %v44
  %652 = vmatpush.msra.mxu0 %v43
  %653 = vmatpush.msra.mxu0 %v42
  %654 = vmatmul.f32.gmra.mxu0 %v633
  %v655 = vpop.f32.mrf.mxu0
  %v656 = vadd.f32 %v630, %v655
  %657 = vmatmul.f32.gmra.mxu0 %v636
  %v658 = vpop.f32.mrf.mxu0
  %v659 = vadd.f32 %v630, %v658
  %660 = vdwg.mxu0
  %663 = vrot.lane.b32.xlu0 %v656, 120
  %v664 = vpop.permute.xlu0 %663
  %665 = vrot.lane.b32.xlu0 %v659, 120
  %v666 = vpop.permute.xlu0 %665
  %667 = vrot.lane.b32.xlu0 %v656, 112
  %v668 = vpop.permute.xlu0 %667
  %669 = vrot.lane.b32.xlu0 %v659, 112
  %v670 = vpop.permute.xlu0 %669
  %671 = vrot.lane.b32.xlu0 %v656, 104
  %v672 = vpop.permute.xlu0 %671
  %673 = vrot.lane.b32.xlu0 %v659, 104
  %v674 = vpop.permute.xlu0 %673
  %675 = vrot.lane.b32.xlu0 %v656, 96
  %v676 = vpop.permute.xlu0 %675
  %677 = vrot.lane.b32.xlu0 %v659, 96
  %v678 = vpop.permute.xlu0 %677
  %679 = vrot.lane.b32.xlu0 %v664, 96
  %v680 = vpop.permute.xlu0 %679
  %681 = vrot.lane.b32.xlu0 %v666, 96
  %v682 = vpop.permute.xlu0 %681
  %683 = vrot.lane.b32.xlu0 %v668, 96
  %v684 = vpop.permute.xlu0 %683
  %685 = vrot.lane.b32.xlu0 %v670, 96
  %v686 = vpop.permute.xlu0 %685
  %687 = vrot.lane.b32.xlu0 %v672, 96
  %v688 = vpop.permute.xlu0 %687
  %689 = vrot.lane.b32.xlu0 %v674, 96
  %v690 = vpop.permute.xlu0 %689
  %v691 = vsel %vm121, %v656, 0
  %v693 = vsel %vm121, %v659, 0
  %v695 = vsel %vm121, %v664, 0
  %v697 = vsel %vm121, %v666, 0
  %v699 = vsel %vm121, %v668, 0
  %v701 = vsel %vm121, %v670, 0
  %v703 = vsel %vm121, %v672, 0
  %v705 = vsel %vm121, %v674, 0
  %v707 = vsel %vm121, %v676, 0
  %v709 = vsel %vm121, %v678, 0
  %v711 = vsel %vm121, %v680, 0
  %v713 = vsel %vm121, %v682, 0
  %v715 = vsel %vm121, %v684, 0
  %v717 = vsel %vm121, %v686, 0
  %v719 = vsel %vm121, %v688, 0
  %v721 = vsel %vm121, %v690, 0
  %723 = vmatpush.xpose.msra.mxu0 0.0
  %724 = vmatpush.xpose.msra.mxu0 0.0
  %725 = vmatpush.xpose.msra.mxu0 0.0
  %726 = vmatpush.xpose.msra.mxu0 0.0
  %727 = vmatpush.xpose.msra.mxu0 0.0
  %728 = vmatpush.xpose.msra.mxu0 0.0
  %729 = vmatpush.xpose.msra.mxu0 0.0
  %730 = vmatpush.xpose.msra.mxu0 0.0
  %731 = vmatpush.xpose.msra.mxu0 %v721
  %732 = vmatpush.xpose.msra.mxu0 %v719
  %733 = vmatpush.xpose.msra.mxu0 %v717
  %734 = vmatpush.xpose.msra.mxu0 %v715
  %735 = vmatpush.xpose.msra.mxu0 %v713
  %736 = vmatpush.xpose.msra.mxu0 %v711
  %737 = vmatpush.xpose.msra.mxu0 %v709
  %738 = vmatpush.xpose.msra.mxu0 %v707
  %739 = vmatmul.f32.gmra.mxu0 %v691
  %v740 = vpop.f32.mrf.mxu0
  %v741 = vadd.f32 0.0, %v740
  %742 = vmatmul.f32.gmra.mxu0 %v693
  %v743 = vpop.f32.mrf.mxu0
  %v744 = vadd.f32 0.0, %v743
  %745 = vmatmul.f32.gmra.mxu0 %v695
  %v746 = vpop.f32.mrf.mxu0
  %v747 = vadd.f32 0.0, %v746
  %748 = vmatmul.f32.gmra.mxu0 %v697
  %v749 = vpop.f32.mrf.mxu0
  %v750 = vadd.f32 0.0, %v749
  %751 = vmatmul.f32.gmra.mxu0 %v699
  %v752 = vpop.f32.mrf.mxu0
  %v753 = vadd.f32 0.0, %v752
  %754 = vmatmul.f32.gmra.mxu0 %v701
  %v755 = vpop.f32.mrf.mxu0
  %v756 = vadd.f32 0.0, %v755
  %757 = vmatmul.f32.gmra.mxu0 %v703
  %v758 = vpop.f32.mrf.mxu0
  %v759 = vadd.f32 0.0, %v758
  %760 = vmatmul.f32.gmra.mxu0 %v705
  %v761 = vpop.f32.mrf.mxu0
  %v762 = vadd.f32 0.0, %v761
  %763 = vdwg.mxu0
  %v764 = vmul.f32 %v741, 0.35355338
  %v765 = vmul.f32 %v744, 0.35355338
  %v766 = vmul.f32 %v747, 0.35355338
  %v767 = vmul.f32 %v750, 0.35355338
  %v768 = vmul.f32 %v753, 0.35355338
  %v769 = vmul.f32 %v756, 0.35355338
  %v770 = vmul.f32 %v759, 0.35355338
  %v771 = vmul.f32 %v762, 0.35355338
  %v772 = vadd.f32 %v764, %v30
  %v773 = vadd.f32 %v765, %v31
  %v774 = vadd.f32 %v766, %v32
  %v775 = vadd.f32 %v767, %v33
  %v776 = vadd.f32 %v768, %v34
  %v777 = vadd.f32 %v769, %v35
  %v778 = vadd.f32 %v770, %v36
  %v779 = vadd.f32 %v771, %v37
  %v780 = vsel %vm211, %v772, -inf
  %781 = vmax.xlane.f32.xlu0 %v780
  %v782 = vpop.xlane.xlu0 %781
  %v783 = vsel %vm211, %v773, -inf
  %784 = vmax.xlane.f32.xlu0 %v783
  %v785 = vpop.xlane.xlu0 %784
  %v786 = vsel %vm211, %v774, -inf
  %787 = vmax.xlane.f32.xlu0 %v786
  %v788 = vpop.xlane.xlu0 %787
  %v789 = vsel %vm211, %v775, -inf
  %790 = vmax.xlane.f32.xlu0 %v789
  %v791 = vpop.xlane.xlu0 %790
  %v792 = vsel %vm211, %v776, -inf
  %793 = vmax.xlane.f32.xlu0 %v792
  %v794 = vpop.xlane.xlu0 %793
  %v795 = vsel %vm211, %v777, -inf
  %796 = vmax.xlane.f32.xlu0 %v795
  %v797 = vpop.xlane.xlu0 %796
  %v798 = vsel %vm211, %v778, -inf
  %799 = vmax.xlane.f32.xlu0 %v798
  %v800 = vpop.xlane.xlu0 %799
  %v801 = vsel %vm211, %v779, -inf
  %802 = vmax.xlane.f32.xlu0 %v801
  %v803 = vpop.xlane.xlu0 %802
  %v804 = vsub.f32 %v772, %v782
  %v805 = vsub.f32 %v773, %v785
  %v806 = vsub.f32 %v774, %v788
  %v807 = vsub.f32 %v775, %v791
  %v808 = vsub.f32 %v776, %v794
  %v809 = vsub.f32 %v777, %v797
  %v810 = vsub.f32 %v778, %v800
  %v811 = vsub.f32 %v779, %v803
  %v812 = vmul.f32 %v804, 1.442695
  %v813 = vpow.pop %v812
  %v814 = vmul.f32 %v805, 1.442695
  %v815 = vpow.pop %v814
  %v816 = vmul.f32 %v806, 1.442695
  %v817 = vpow.pop %v816
  %v818 = vmul.f32 %v807, 1.442695
  %v819 = vpow.pop %v818
  %v820 = vmul.f32 %v808, 1.442695
  %v821 = vpow.pop %v820
  %v822 = vmul.f32 %v809, 1.442695
  %v823 = vpow.pop %v822
  %v824 = vmul.f32 %v810, 1.442695
  %v825 = vpow.pop %v824
  %v826 = vmul.f32 %v811, 1.442695
  %v827 = vpow.pop %v826
  %v828 = vsel %vm211, %v813, 0.0
  %829 = vadd.xlane.f32.xlu0 %v828
  %v830 = vpop.xlane.xlu0 %829
  %v831 = vsel %vm211, %v815, 0.0
  %832 = vadd.xlane.f32.xlu0 %v831
  %v833 = vpop.xlane.xlu0 %832
  %v834 = vsel %vm211, %v817, 0.0
  %835 = vadd.xlane.f32.xlu0 %v834
  %v836 = vpop.xlane.xlu0 %835
  %v837 = vsel %vm211, %v819, 0.0
  %838 = vadd.xlane.f32.xlu0 %v837
  %v839 = vpop.xlane.xlu0 %838
  %v840 = vsel %vm211, %v821, 0.0
  %841 = vadd.xlane.f32.xlu0 %v840
  %v842 = vpop.xlane.xlu0 %841
  %v843 = vsel %vm211, %v823, 0.0
  %844 = vadd.xlane.f32.xlu0 %v843
  %v845 = vpop.xlane.xlu0 %844
  %v846 = vsel %vm211, %v825, 0.0
  %847 = vadd.xlane.f32.xlu0 %v846
  %v848 = vpop.xlane.xlu0 %847
  %v849 = vsel %vm211, %v827, 0.0
  %850 = vadd.xlane.f32.xlu0 %v849
  %v851 = vpop.xlane.xlu0 %850
  %v852 = vrcp.pop %v830
  %v853 = vmul.f32 %v830, %v852
  %v854 = vsub.f32 1.0, %v853
  %v855 = vmul.f32 %v852, %v854
  %v856 = vadd.f32 %v852, %v855
  %vm857 = vweird.f32 %v830
  %vm858 = vweird.f32 %v852
  %vm859 = vmor %vm857, %vm858
  %v860 = vsel %vm859, %v852, %v856
  %v861 = vand.u32 2147483647, %v830
  %vm862 = vcmp.eq.f32.partialorder %v861, 8.507059e+37
  %v863 = vand.u32 %v830, 2147483648
  %v864 = vor.u32 1.1754944e-38, %v863
  %v865 = vsel %vm862, %v864, %v860
  %v866 = vrcp.pop %v833
  %v867 = vmul.f32 %v833, %v866
  %v868 = vsub.f32 1.0, %v867
  %v869 = vmul.f32 %v866, %v868
  %v870 = vadd.f32 %v866, %v869
  %vm871 = vweird.f32 %v833
  %vm872 = vweird.f32 %v866
  %vm873 = vmor %vm871, %vm872
  %v874 = vsel %vm873, %v866, %v870
  %v875 = vand.u32 2147483647, %v833
  %vm876 = vcmp.eq.f32.partialorder %v875, 8.507059e+37
  %v877 = vand.u32 %v833, 2147483648
  %v878 = vor.u32 1.1754944e-38, %v877
  %v879 = vsel %vm876, %v878, %v874
  %v880 = vrcp.pop %v836
  %v881 = vmul.f32 %v836, %v880
  %v882 = vsub.f32 1.0, %v881
  %v883 = vmul.f32 %v880, %v882
  %v884 = vadd.f32 %v880, %v883
  %vm885 = vweird.f32 %v836
  %vm886 = vweird.f32 %v880
  %vm887 = vmor %vm885, %vm886
  %v888 = vsel %vm887, %v880, %v884
  %v889 = vand.u32 2147483647, %v836
  %vm890 = vcmp.eq.f32.partialorder %v889, 8.507059e+37
  %v891 = vand.u32 %v836, 2147483648
  %v892 = vor.u32 1.1754944e-38, %v891
  %v893 = vsel %vm890, %v892, %v888
  %v894 = vrcp.pop %v839
  %v895 = vmul.f32 %v839, %v894
  %v896 = vsub.f32 1.0, %v895
  %v897 = vmul.f32 %v894, %v896
  %v898 = vadd.f32 %v894, %v897
  %vm899 = vweird.f32 %v839
  %vm900 = vweird.f32 %v894
  %vm901 = vmor %vm899, %vm900
  %v902 = vsel %vm901, %v894, %v898
  %v903 = vand.u32 2147483647, %v839
  %vm904 = vcmp.eq.f32.partialorder %v903, 8.507059e+37
  %v905 = vand.u32 %v839, 2147483648
  %v906 = vor.u32 1.1754944e-38, %v905
  %v907 = vsel %vm904, %v906, %v902
  %v908 = vrcp.pop %v842
  %v909 = vmul.f32 %v842, %v908
  %v910 = vsub.f32 1.0, %v909
  %v911 = vmul.f32 %v908, %v910
  %v912 = vadd.f32 %v908, %v911
  %vm913 = vweird.f32 %v842
  %vm914 = vweird.f32 %v908
  %vm915 = vmor %vm913, %vm914
  %v916 = vsel %vm915, %v908, %v912
  %v917 = vand.u32 2147483647, %v842
  %vm918 = vcmp.eq.f32.partialorder %v917, 8.507059e+37
  %v919 = vand.u32 %v842, 2147483648
  %v920 = vor.u32 1.1754944e-38, %v919
  %v921 = vsel %vm918, %v920, %v916
  %v922 = vrcp.pop %v845
  %v923 = vmul.f32 %v845, %v922
  %v924 = vsub.f32 1.0, %v923
  %v925 = vmul.f32 %v922, %v924
  %v926 = vadd.f32 %v922, %v925
  %vm927 = vweird.f32 %v845
  %vm928 = vweird.f32 %v922
  %vm929 = vmor %vm927, %vm928
  %v930 = vsel %vm929, %v922, %v926
  %v931 = vand.u32 2147483647, %v845
  %vm932 = vcmp.eq.f32.partialorder %v931, 8.507059e+37
  %v933 = vand.u32 %v845, 2147483648
  %v934 = vor.u32 1.1754944e-38, %v933
  %v935 = vsel %vm932, %v934, %v930
  %v936 = vrcp.pop %v848
  %v937 = vmul.f32 %v848, %v936
  %v938 = vsub.f32 1.0, %v937
  %v939 = vmul.f32 %v936, %v938
  %v940 = vadd.f32 %v936, %v939
  %vm941 = vweird.f32 %v848
  %vm942 = vweird.f32 %v936
  %vm943 = vmor %vm941, %vm942
  %v944 = vsel %vm943, %v936, %v940
  %v945 = vand.u32 2147483647, %v848
  %vm946 = vcmp.eq.f32.partialorder %v945, 8.507059e+37
  %v947 = vand.u32 %v848, 2147483648
  %v948 = vor.u32 1.1754944e-38, %v947
  %v949 = vsel %vm946, %v948, %v944
  %v950 = vrcp.pop %v851
  %v951 = vmul.f32 %v851, %v950
  %v952 = vsub.f32 1.0, %v951
  %v953 = vmul.f32 %v950, %v952
  %v954 = vadd.f32 %v950, %v953
  %vm955 = vweird.f32 %v851
  %vm956 = vweird.f32 %v950
  %vm957 = vmor %vm955, %vm956
  %v958 = vsel %vm957, %v950, %v954
  %v959 = vand.u32 2147483647, %v851
  %vm960 = vcmp.eq.f32.partialorder %v959, 8.507059e+37
  %v961 = vand.u32 %v851, 2147483648
  %v962 = vor.u32 1.1754944e-38, %v961
  %v963 = vsel %vm960, %v962, %v958
  %v964 = vmul.f32 %v813, %v865
  %v965 = vmul.f32 %v815, %v879
  %v966 = vmul.f32 %v817, %v893
  %v967 = vmul.f32 %v819, %v907
  %v968 = vmul.f32 %v821, %v921
  %v969 = vmul.f32 %v823, %v935
  %v970 = vmul.f32 %v825, %v949
  %v971 = vmul.f32 %v827, %v963
  %972 = vrot.lane.b32.xlu0 %v656, 64
  %v973 = vpop.permute.xlu0 %972
  %974 = vrot.lane.b32.xlu0 %v659, 64
  %v975 = vpop.permute.xlu0 %974
  %976 = vrot.lane.b32.xlu0 %v664, 64
  %v977 = vpop.permute.xlu0 %976
  %978 = vrot.lane.b32.xlu0 %v666, 64
  %v979 = vpop.permute.xlu0 %978
  %980 = vrot.lane.b32.xlu0 %v668, 64
  %v981 = vpop.permute.xlu0 %980
  %982 = vrot.lane.b32.xlu0 %v670, 64
  %v983 = vpop.permute.xlu0 %982
  %984 = vrot.lane.b32.xlu0 %v672, 64
  %v985 = vpop.permute.xlu0 %984
  %986 = vrot.lane.b32.xlu0 %v674, 64
  %v987 = vpop.permute.xlu0 %986
  %v997 = vsel %vm211, %v964, 0
  %v1000 = vsel %vm211, %v965, 0
  %v1003 = vsel %vm211, %v966, 0
  %v1006 = vsel %vm211, %v967, 0
  %v1009 = vsel %vm211, %v968, 0
  %v1012 = vsel %vm211, %v969, 0
  %v1015 = vsel %vm211, %v970, 0
  %v1018 = vsel %vm211, %v971, 0
  %1020 = vmatpush.msra.mxu0 0.0
  %1021 = vmatpush.msra.mxu0 0.0
  %1022 = vmatpush.msra.mxu0 0.0
  %1023 = vmatpush.msra.mxu0 0.0
  %1024 = vmatpush.msra.mxu0 0.0
  %1025 = vmatpush.msra.mxu0 0.0
  %1026 = vmatpush.msra.mxu0 0.0
  %1027 = vmatpush.msra.mxu0 0.0
  %1028 = vmatpush.msra.mxu0 %v987
  %1029 = vmatpush.msra.mxu0 %v985
  %1030 = vmatpush.msra.mxu0 %v983
  %1031 = vmatpush.msra.mxu0 %v981
  %1032 = vmatpush.msra.mxu0 %v979
  %1033 = vmatpush.msra.mxu0 %v977
  %1034 = vmatpush.msra.mxu0 %v975
  %1035 = vmatpush.msra.mxu0 %v973
  %1036 = vmatmul.f32.gmra.mxu0 %v997
  %v1037 = vpop.f32.mrf.mxu0
  %v1038 = vadd.f32 0.0, %v1037
  %1039 = vmatmul.f32.gmra.mxu0 %v1000
  %v1040 = vpop.f32.mrf.mxu0
  %v1041 = vadd.f32 0.0, %v1040
  %1042 = vmatmul.f32.gmra.mxu0 %v1003
  %v1043 = vpop.f32.mrf.mxu0
  %v1044 = vadd.f32 0.0, %v1043
  %1045 = vmatmul.f32.gmra.mxu0 %v1006
  %v1046 = vpop.f32.mrf.mxu0
  %v1047 = vadd.f32 0.0, %v1046
  %1048 = vmatmul.f32.gmra.mxu0 %v1009
  %v1049 = vpop.f32.mrf.mxu0
  %v1050 = vadd.f32 0.0, %v1049
  %1051 = vmatmul.f32.gmra.mxu0 %v1012
  %v1052 = vpop.f32.mrf.mxu0
  %v1053 = vadd.f32 0.0, %v1052
  %1054 = vmatmul.f32.gmra.mxu0 %v1015
  %v1055 = vpop.f32.mrf.mxu0
  %v1056 = vadd.f32 0.0, %v1055
  %1057 = vmatmul.f32.gmra.mxu0 %v1018
  %v1058 = vpop.f32.mrf.mxu0
  %v1059 = vadd.f32 0.0, %v1058
  %1060 = vdwg.mxu0
  %1063 = vrot.lane.b32.xlu0 %v1044, 8
  %v1064 = vpop.permute.xlu0 %1063
  %1065 = vrot.lane.b32.xlu0 %v1047, 8
  %v1066 = vpop.permute.xlu0 %1065
  %1071 = vrot.lane.b32.xlu0 %v1050, 16
  %v1072 = vpop.permute.xlu0 %1071
  %1073 = vrot.lane.b32.xlu0 %v1053, 16
  %v1074 = vpop.permute.xlu0 %1073
  %1079 = vrot.lane.b32.xlu0 %v1056, 24
  %v1080 = vpop.permute.xlu0 %1079
  %1081 = vrot.lane.b32.xlu0 %v1059, 24
  %v1082 = vpop.permute.xlu0 %1081
  %v1085 = vsel %vm121, %v1038, %v1064
  %v1086 = vsel %vm121, %v1041, %v1066
  %v1087 = vsel %vm519, %v1085, %v1072
  %v1088 = vsel %vm519, %v1086, %v1074
  %v1089 = vsel %vm522, %v1087, %v1080
  %v1090 = vsel %vm522, %v1088, %v1082
  %1095 = vrot.lane.b32.xlu0 %v51, 96
  %v1096 = vpop.permute.xlu0 %1095
  %1097 = vrot.lane.b32.xlu0 %v52, 96
  %v1098 = vpop.permute.xlu0 %1097
  %1099 = vrot.lane.b32.xlu0 %v53, 96
  %v1100 = vpop.permute.xlu0 %1099
  %1101 = vrot.lane.b32.xlu0 %v54, 96
  %v1102 = vpop.permute.xlu0 %1101
  %1108 = vrot.lane.b32.xlu0 %v525, 96
  %v1109 = vpop.permute.xlu0 %1108
  %v1112 = vsel %vm61, %v1089, 0
  %v1115 = vsel %vm61, %v1090, 0
  %1117 = vmatpush.msra.mxu0 0.0
  %1118 = vmatpush.msra.mxu0 0.0
  %1119 = vmatpush.msra.mxu0 0.0
  %1120 = vmatpush.msra.mxu0 0.0
  %1121 = vmatpush.msra.mxu0 0.0
  %1122 = vmatpush.msra.mxu0 0.0
  %1123 = vmatpush.msra.mxu0 0.0
  %1124 = vmatpush.msra.mxu0 0.0
  %1125 = vmatpush.msra.mxu0 0.0
  %1126 = vmatpush.msra.mxu0 0.0
  %1127 = vmatpush.msra.mxu0 0.0
  %1128 = vmatpush.msra.mxu0 0.0
  %1129 = vmatpush.msra.mxu0 %v1102
  %1130 = vmatpush.msra.mxu0 %v1100
  %1131 = vmatpush.msra.mxu0 %v1098
  %1132 = vmatpush.msra.mxu0 %v1096
  %1133 = vmatmul.f32.gmra.mxu0 %v1112
  %v1134 = vpop.f32.mrf.mxu0
  %v1135 = vadd.f32 %v1109, %v1134
  %1136 = vmatmul.f32.gmra.mxu0 %v1115
  %v1137 = vpop.f32.mrf.mxu0
  %v1138 = vadd.f32 %v1109, %v1137
  %1139 = vdwg.mxu0
  %v1140 = vadd.f32 %v17, %v1135
  %v1141 = vadd.f32 %v18, %v1138
  %v1142 = vsel %vm61, %v1140, 0.0
  %1143 = vadd.xlane.f32.xlu0 %v1142
  %v1144 = vpop.xlane.xlu0 %1143
  %v1145 = vsel %vm61, %v1141, 0.0
  %1146 = vadd.xlane.f32.xlu0 %v1145
  %v1147 = vpop.xlane.xlu0 %1146
  %v1148 = vmul.f32 %v1144, %v569
  %v1149 = vmul.f32 %v1147, %v569
  %v1150 = vsub.f32 %v1140, %v1148
  %v1151 = vsub.f32 %v1141, %v1149
  %v1152 = vmul.f32 %v1150, %v1150
  %v1153 = vmul.f32 %v1151, %v1151
  %v1154 = vsel %vm61, %v1152, 0.0
  %1155 = vadd.xlane.f32.xlu0 %v1154
  %v1156 = vpop.xlane.xlu0 %1155
  %v1157 = vsel %vm61, %v1153, 0.0
  %1158 = vadd.xlane.f32.xlu0 %v1157
  %v1159 = vpop.xlane.xlu0 %1158
  %v1160 = vmul.f32 %v1156, %v569
  %v1161 = vmul.f32 %v1159, %v569
  %v1162 = vadd.f32 %v1160, 1e-05
  %v1163 = vadd.f32 %v1161, 1e-05
  %v1164 = vrsqrt.pop %v1162
  %v1165 = vmul.f32 %v1164, %v1162
  %v1166 = vmul.f32 %v1165, %v1164
  %v1167 = vmul.f32 0.5, %v1166
  %v1168 = vsub.f32 1.5, %v1167
  %v1169 = vmul.f32 %v1164, %v1168
  %vm1170 = vweird.f32 %v1162
  %vm1171 = vweird.f32 %v1164
  %vm1172 = vmor %vm1170, %vm1171
  %v1173 = vsel %vm1172, %v1164, %v1169
  %v1174 = vrsqrt.pop %v1163
  %v1175 = vmul.f32 %v1174, %v1163
  %v1176 = vmul.f32 %v1175, %v1174
  %v1177 = vmul.f32 0.5, %v1176
  %v1178 = vsub.f32 1.5, %v1177
  %v1179 = vmul.f32 %v1174, %v1178
  %vm1180 = vweird.f32 %v1163
  %vm1181 = vweird.f32 %v1174
  %vm1182 = vmor %vm1180, %vm1181
  %v1183 = vsel %vm1182, %v1174, %v1179
  %v1184 = vmul.f32 %v1150, %v1173
  %v1185 = vmul.f32 %v1151, %v1183
  %v1186 = vperm.slane %v59, 4
  %v1187 = vmul.f32 %v1184, %v1186
  %v1188 = vmul.f32 %v1185, %v1186
  %1190 = vrot.lane.b32.xlu0 %v1186, 96
  %v1191 = vpop.permute.xlu0 %1190
  %v1193 = vadd.f32 %v1187, %v1191
  %v1194 = vadd.f32 %v1188, %v1191
  %1195 = vrot.lane.b32.xlu0 %v51, 64
  %v1196 = vpop.permute.xlu0 %1195
  %1197 = vrot.lane.b32.xlu0 %v52, 64
  %v1198 = vpop.permute.xlu0 %1197
  %1199 = vrot.lane.b32.xlu0 %v53, 64
  %v1200 = vpop.permute.xlu0 %1199
  %1201 = vrot.lane.b32.xlu0 %v54, 64
  %v1202 = vpop.permute.xlu0 %1201
  %1207 = vrot.lane.b32.xlu0 %v525, 64
  %v1208 = vpop.permute.xlu0 %1207
  %v1211 = vsel %vm61, %v1193, 0
  %v1214 = vsel %vm61, %v1194, 0
  %1216 = vmatpush.msra.mxu0 0.0
  %1217 = vmatpush.msra.mxu0 0.0
  %1218 = vmatpush.msra.mxu0 0.0
  %1219 = vmatpush.msra.mxu0 0.0
  %1220 = vmatpush.msra.mxu0 0.0
  %1221 = vmatpush.msra.mxu0 0.0
  %1222 = vmatpush.msra.mxu0 0.0
  %1223 = vmatpush.msra.mxu0 0.0
  %1224 = vmatpush.msra.mxu0 0.0
  %1225 = vmatpush.msra.mxu0 0.0
  %1226 = vmatpush.msra.mxu0 0.0
  %1227 = vmatpush.msra.mxu0 0.0
  %1228 = vmatpush.msra.mxu0 %v1202
  %1229 = vmatpush.msra.mxu0 %v1200
  %1230 = vmatpush.msra.mxu0 %v1198
  %1231 = vmatpush.msra.mxu0 %v1196
  %1232 = vmatmul.f32.gmra.mxu0 %v1211
  %v1233 = vpop.f32.mrf.mxu0
  %v1234 = vadd.f32 %v1208, %v1233
  %1235 = vmatmul.f32.gmra.mxu0 %v1214
  %v1236 = vpop.f32.mrf.mxu0
  %v1237 = vadd.f32 %v1208, %v1236
  %1238 = vdwg.mxu0
  %v1239 = vmax.f32 %v1234, 0.0
  %v1240 = vmax.f32 %v1237, 0.0
  %v1242 = vsel %vm61, %v1239, 0
  %v1245 = vsel %vm61, %v1240, 0
  %1247 = vmatpush.msra.mxu0 0.0
  %1248 = vmatpush.msra.mxu0 0.0
  %1249 = vmatpush.msra.mxu0 0.0
  %1250 = vmatpush.msra.mxu0 0.0
  %1251 = vmatpush.msra.mxu0 0.0
  %1252 = vmatpush.msra.mxu0 0.0
  %1253 = vmatpush.msra.mxu0 0.0
  %1254 = vmatpush.msra.mxu0 0.0
  %1255 = vmatpush.msra.mxu0 0.0
  %1256 = vmatpush.msra.mxu0 0.0
  %1257 = vmatpush.msra.mxu0 0.0
  %1258 = vmatpush.msra.mxu0 0.0
  %1259 = vmatpush.msra.mxu0 %v58
  %1260 = vmatpush.msra.mxu0 %v57
  %1261 = vmatpush.msra.mxu0 %v56
  %1262 = vmatpush.msra.mxu0 %v55
  %1263 = vmatmul.f32.gmra.mxu0 %v1242
  %v1264 = vpop.f32.mrf.mxu0
  %v1265 = vadd.f32 %v608, %v1264
  %1266 = vmatmul.f32.gmra.mxu0 %v1245
  %v1267 = vpop.f32.mrf.mxu0
  %v1268 = vadd.f32 %v608, %v1267
  %1269 = vdwg.mxu0
  %v1270 = vadd.f32 %v1193, %v1265
  %v1271 = vadd.f32 %v1194, %v1268
  %v1272 = vsel %vm61, %v1270, 0.0
  %1273 = vadd.xlane.f32.xlu0 %v1272
  %v1274 = vpop.xlane.xlu0 %1273
  %v1275 = vsel %vm61, %v1271, 0.0
  %1276 = vadd.xlane.f32.xlu0 %v1275
  %v1277 = vpop.xlane.xlu0 %1276
  %v1278 = vmul.f32 %v1274, %v569
  %v1279 = vmul.f32 %v1277, %v569
  %v1280 = vsub.f32 %v1270, %v1278
  %v1281 = vsub.f32 %v1271, %v1279
  %v1282 = vmul.f32 %v1280, %v1280
  %v1283 = vmul.f32 %v1281, %v1281
  %v1284 = vsel %vm61, %v1282, 0.0
  %1285 = vadd.xlane.f32.xlu0 %v1284
  %v1286 = vpop.xlane.xlu0 %1285
  %v1287 = vsel %vm61, %v1283, 0.0
  %1288 = vadd.xlane.f32.xlu0 %v1287
  %v1289 = vpop.xlane.xlu0 %1288
  %v1290 = vmul.f32 %v1286, %v569
  %v1291 = vmul.f32 %v1289, %v569
  %v1292 = vadd.f32 %v1290, 1e-05
  %v1293 = vadd.f32 %v1291, 1e-05
  %v1294 = vrsqrt.pop %v1292
  %v1295 = vmul.f32 %v1294, %v1292
  %v1296 = vmul.f32 %v1295, %v1294
  %v1297 = vmul.f32 0.5, %v1296
  %v1298 = vsub.f32 1.5, %v1297
  %v1299 = vmul.f32 %v1294, %v1298
  %vm1300 = vweird.f32 %v1292
  %vm1301 = vweird.f32 %v1294
  %vm1302 = vmor %vm1300, %vm1301
  %v1303 = vsel %vm1302, %v1294, %v1299
  %v1304 = vrsqrt.pop %v1293
  %v1305 = vmul.f32 %v1304, %v1293
  %v1306 = vmul.f32 %v1305, %v1304
  %v1307 = vmul.f32 0.5, %v1306
  %v1308 = vsub.f32 1.5, %v1307
  %v1309 = vmul.f32 %v1304, %v1308
  %vm1310 = vweird.f32 %v1293
  %vm1311 = vweird.f32 %v1304
  %vm1312 = vmor %vm1310, %vm1311
  %v1313 = vsel %vm1312, %v1304, %v1309
  %v1314 = vmul.f32 %v1280, %v1303
  %v1315 = vmul.f32 %v1281, %v1313
  %1316 = vrot.lane.b32.xlu0 %v1186, 64
  %v1317 = vpop.permute.xlu0 %1316
  %v1319 = vmul.f32 %v1314, %v1317
  %v1320 = vmul.f32 %v1315, %v1317
  %v1321 = vperm.slane %v59, 5
  %v1322 = vadd.f32 %v1319, %v1321
  %v1323 = vadd.f32 %v1320, %v1321
  %1324 = vst.msk [vmem:[%s4] sm:$0xff] %vm61, %v1322
  %1325 = vst.msk [vmem:[%s4 + $0x8] sm:$0xff] %vm61, %v1323
  // Predicated region
  $region18: #{_forward_impl.1} parent=0 // pred_check
    _
  $region19: #{_forward_impl.1} parent=0 // pred_check_branch
    %1327 = sbr.rel (0) target = $region21
  $region20: #{_forward_impl.1} parent=0 // pred_region
    _
  $region21: #{_forward_impl.1} parent=0 // pred_fallthru
    _
  // Predicated region
  $region22: #{_forward_impl.1} parent=0 // pred_check
    _
  $region23: #{_forward_impl.1} parent=0 // pred_check_branch
    %1329 = sbr.rel (0) target = $region25
  $region24: #{_forward_impl.1} parent=0 // pred_region
    _
  $region25: #{_forward_impl.1} parent=0 // pred_fallthru
    _

</llo_original>
